<compile_context>
chip_gen: v7x
topology: tpu7x:2x2x1
jax: 0.10.0
libtpu: 0.0.40
codegen_flags: <defaults>
</compile_context>

<pallas_src>
import functools

import jax
import jax.numpy as jnp
import numpy as np
from jax import lax
from jax.experimental import pallas as pl
from jax.experimental.pallas import tpu as pltpu


STAT_ROWS = 8  # per-split stats slab: rows [0:K]=acc (K,L), [K:2K]=m (lane-bcast), [2K:3K]=l


# ---------------------------------------------------------------------------
# Pass 1: per-split partial online softmax + unnormalized M accumulator.
# Grid = (n_split, blocks_per_split); axis 0 is "parallel" (v7x megacore), axis 1 streams
# (TN, L) x tiles of that split.  Per tile:
#   h     = x @ [Wv | Wu] + [bv | bu]                      (TN, 2D)
#   g     = tanh(h[:, :D]) * sigmoid(h[:, D:])             (TN, D)   (bf16 on v6e/v7x)
#   s     = g @ Ww + bw                                    (TN, K)   (bf16 MXU, masked rows -inf)
#   online softmax over instances (running m, l per head); acc = alpha*acc + p^T x  (K, L)
# last tile of the split: pack (acc, m, l) into an (8, L) stats slab.
# ---------------------------------------------------------------------------
def _partial_kernel(x_ref, wvu_ref, bvu_ref, ww_ref, bw_ref,
                    stats_ref,
                    m_scr, l_scr, acc_scr,
                    *, n_valid, block_n, blocks_per_split, d, k_heads, act_bf16):
    c = pl.program_id(0)
    i = pl.program_id(1)
    neg_inf = jnp.float32(-jnp.inf)

    @pl.when(i == 0)
    def _init():
        m_scr[...] = jnp.full_like(m_scr, -jnp.inf)
        l_scr[...] = jnp.zeros_like(l_scr)
        acc_scr[...] = jnp.zeros_like(acc_scr)

    x_bf = x_ref[...]                                    # (TN, L) bf16
    x_f32 = x_bf.astype(jnp.float32)

    # Fused V/U projection: one long MXU run, f32 accumulation.
    h = jnp.dot(x_bf, wvu_ref[...], preferred_element_type=jnp.float32) + bvu_ref[...]
    if act_bf16:
        # bf16 transcendentals + gating (v6e/v7x): halves EUP pushes and vreg/VMEM traffic.
        h_act = h.astype(jnp.bfloat16)
        a_v = jnp.tanh(h_act[:, :d])                     # (TN, D) bf16
        a_u = jax.nn.sigmoid(h_act[:, d:])               # (TN, D) bf16
        gated = a_v * a_u                                # (TN, D) bf16
    else:
        a_v = jnp.tanh(h[:, :d])                         # f32 (v5e: no bf16 VPU/EUP)
        a_u = jax.nn.sigmoid(h[:, d:])
        gated = (a_v * a_u).astype(jnp.bfloat16)         # bf16 only for the score MXU

    # Attention scores for this tile: bf16 x bf16 on the MXU, f32 accumulation.
    s = jnp.dot(gated, ww_ref[...], preferred_element_type=jnp.float32) + bw_ref[...]

    # Mask padded instance rows (global row index across splits).
    row = (c * blocks_per_split + i) * block_n + lax.broadcasted_iota(
        jnp.int32, (block_n, 1), 0)
    s = jnp.where(row < n_valid, s, neg_inf)             # (TN, K)

    # Online softmax over the instance axis (axis 0), per head.
    m_prev = m_scr[...]                                  # (1, K)
    m_new = jnp.maximum(m_prev, jnp.max(s, axis=0, keepdims=True))
    # Guard: a fully-masked tile/split keeps m_new = -inf; subtract a finite surrogate so
    # alpha / p stay finite (they become 0) instead of NaN.
    m_sub = jnp.where(m_new == neg_inf, jnp.zeros_like(m_new), m_new)
    alpha = jnp.exp(m_prev - m_sub)                      # (1, K)
    p = jnp.exp(s - m_sub)                               # (TN, K); masked rows -> 0

    l_scr[...] = alpha * l_scr[...] + jnp.sum(p, axis=0, keepdims=True)
    m_scr[...] = m_new

    # acc[k, :] = alpha_k * acc[k, :] + sum_n p[n, k] * x[n, :]  (K=2: static unroll, VPU path)
    for kk in range(k_heads):
        a_k = alpha[:, kk:kk + 1]                                          # (1, 1)
        row_sum = jnp.sum(p[:, kk:kk + 1] * x_f32, axis=0, keepdims=True)  # (1, L)
        acc_scr[kk:kk + 1, :] = a_k * acc_scr[kk:kk + 1, :] + row_sum

    @pl.when(i == pl.num_programs(1) - 1)
    def _emit_partial():
        l_feat = acc_scr.shape[1]
        ones_l = jnp.ones((1, l_feat), jnp.float32)
        stats_ref[0:k_heads, :] = acc_scr[...]
        m_row = m_scr[...]                               # (1, K)
        l_row = l_scr[...]                               # (1, K)
        for kk in range(k_heads):
            stats_ref[k_heads + kk:k_heads + kk + 1, :] = m_row[:, kk:kk + 1] * ones_l
            stats_ref[2 * k_heads + kk:2 * k_heads + kk + 1, :] = l_row[:, kk:kk + 1] * ones_l
        stats_ref[3 * k_heads:, :] = jnp.zeros((STAT_ROWS - 3 * k_heads, l_feat), jnp.float32)


# ---------------------------------------------------------------------------
# Pass 2 (tiny): exact combine of per-split softmax states + epilogue.
#   m_g = max_c m_c ; coef_c = exp(m_c - m_g) ; l_g = sum coef_c l_c ; acc_g = sum coef_c acc_c
#   M   = acc_g / l_g ; z_u = sum(M * Wz) + bz
#   out = sigmoid(B_hi - z_u) - sigmoid(B_lo - z_u)
# ---------------------------------------------------------------------------
def _combine_kernel(stats_ref, wz_ref, bz_ref, bhi_ref, blo_ref, out_ref,
                    *, n_split, k_heads):
    neg_inf = jnp.float32(-jnp.inf)
    l_feat = stats_ref.shape[1]
    z = jnp.zeros((1, 1), jnp.float32)
    for kk in range(k_heads):
        m_rows = [stats_ref[c * STAT_ROWS + k_heads + kk:c * STAT_ROWS + k_heads + kk + 1, :]
                  for c in range(n_split)]
        m_g = m_rows[0]
        for r in m_rows[1:]:
            m_g = jnp.maximum(m_g, r)
        m_g = jnp.where(m_g == neg_inf, jnp.zeros_like(m_g), m_g)   # defensive
        l_g = jnp.zeros((1, l_feat), jnp.float32)
        acc_g = jnp.zeros((1, l_feat), jnp.float32)
        for c in range(n_split):
            coef = jnp.exp(m_rows[c] - m_g)                          # empty split -> 0
            l_row = stats_ref[c * STAT_ROWS + 2 * k_heads + kk:
                              c * STAT_ROWS + 2 * k_heads + kk + 1, :]
            a_row = stats_ref[c * STAT_ROWS + kk:c * STAT_ROWS + kk + 1, :]
            l_g = l_g + coef * l_row
            acc_g = acc_g + coef * a_row
        m_k = acc_g * pl.reciprocal(l_g, approx=False)               # (1, L)
        z = z + jnp.sum(m_k * wz_ref[kk:kk + 1, :], axis=1, keepdims=True)
    z_u = z + bz_ref[...]                                            # (1, 1)
    # Ordinal CDF differences; +/-inf boundaries give sigmoid() = 1 / 0 exactly (f32).
    out_ref[...] = (jax.nn.sigmoid(bhi_ref[...] - z_u)
                    - jax.nn.sigmoid(blo_ref[...] - z_u))


def _device_config():
    """Resolve (act_bf16, n_split, vmem_limit_bytes) from the local TPU generation."""
    kind = ""
    try:
        kind = jax.devices()[0].device_kind.lower()
    except Exception:
        pass
    is_v5 = "v5" in kind
    is_v7 = "v7" in kind
    act_bf16 = not is_v5                 # bf16 VPU/EUP only on v6e/v7x
    n_split = 2 if is_v7 else 1          # v7x: split the softmax reduction across both TCs
    vmem_cap = (64 if is_v7 else 128) * 1024 * 1024
    try:
        info = pltpu.get_tpu_info()
        vmem_cap = int(getattr(info, "vmem_capacity_bytes", vmem_cap))
    except Exception:
        pass
    vmem_limit = int(min(vmem_cap * 0.70, 96 * 1024 * 1024))
    return act_bf16, n_split, vmem_limit


def gated_attention_forward(x, params, *, tn=None, bf16_act=None, n_split=None,
                            vmem_limit_bytes=None):
    """x: (1, N, L) float32. Returns (consecutive_prob, B, var_scaling)."""
    x2d = x[0]                                           # squeeze(0) -> (N, L)
    N, L = x2d.shape
    D = params["wv"].shape[1]
    K = params["ww"].shape[1]
    C = params["b_hi"].shape[1]                          # output_class

    auto_act, auto_split, auto_vmem = _device_config()
    if bf16_act is None:
        bf16_act = auto_act
    if n_split is None:
        n_split = auto_split
    if vmem_limit_bytes is None:
        vmem_limit_bytes = auto_vmem

    # Tile size over instances: budget the dominant VMEM consumer -- the (TN, 2D) projection
    # intermediates (f32 h + activation temps) -- not the 2-byte x tile.  D=512 -> TN ~ 1024.
    if tn is None:
        act_budget = 16 * 1024 * 1024
        bytes_per_row = 2 * D * 16                       # conservative: h(f32) + temps
        rows = max(128, act_budget // max(bytes_per_row, 1))
        tn = int(min(2048, (rows // 128) * 128))
        tn = min(tn, max(128, ((N + 127) // 128) * 128))
    blocks_total = -(-N // tn)
    n_split = max(1, min(n_split, blocks_total))
    blocks_per_split = -(-blocks_total // n_split)
    n_pad = n_split * blocks_per_split * tn

    # bf16 streamed input (zero-pad to a whole number of tiles).
    x_q = x2d.astype(jnp.bfloat16)
    if n_pad != N:
        x_q = jnp.pad(x_q, ((0, n_pad - N), (0, 0)))

    # Fuse the V / U projections into a single (L, 2D) bf16 weight + (1, 2D) f32 bias.
    wvu = jnp.concatenate([params["wv"], params["wu"]], axis=1).astype(jnp.bfloat16)
    bvu = jnp.concatenate([params["bv"], params["bu"]], axis=1)          # f32
    ww_bf = params["ww"].astype(jnp.bfloat16)                            # bf16 score weight

    partial = functools.partial(
        _partial_kernel, n_valid=N, block_n=tn, blocks_per_split=blocks_per_split,
        d=D, k_heads=K, act_bf16=bf16_act)

    resident = lambda shape: pl.BlockSpec(shape, lambda c, i: tuple(0 for _ in shape))

    stats = pl.pallas_call(
        partial,
        out_shape=jax.ShapeDtypeStruct((n_split * STAT_ROWS, L), jnp.float32),
        grid_spec=pltpu.PrefetchScalarGridSpec(
            num_scalar_prefetch=0,
            grid=(n_split, blocks_per_split),
            in_specs=[
                pl.BlockSpec((tn, L), lambda c, i: (c * blocks_per_split + i, 0)),  # x tile
                resident((L, 2 * D)),                               # fused Wv|Wu (bf16)
                resident((1, 2 * D)),                               # fused bv|bu
                resident((D, K)),                                   # Ww (bf16)
                resident((1, K)),                                   # bw
            ],
            out_specs=pl.BlockSpec((STAT_ROWS, L), lambda c, i: (c, 0)),
            scratch_shapes=[
                pltpu.VMEM((1, K), jnp.float32),                    # running max
                pltpu.VMEM((1, K), jnp.float32),                    # running sum
                pltpu.VMEM((K, L), jnp.float32),                    # M accumulator
            ],
        ),
        compiler_params=pltpu.CompilerParams(
            dimension_semantics=("parallel", "arbitrary"),          # v7x: split N over 2 TCs
            vmem_limit_bytes=vmem_limit_bytes,
        ),
    )(x_q, wvu, bvu, ww_bf, params["bw"])

    combine = functools.partial(_combine_kernel, n_split=n_split, k_heads=K)
    consecutive_prob = pl.pallas_call(
        combine,
        out_shape=jax.ShapeDtypeStruct((1, C), jnp.float32),
        grid_spec=pltpu.PrefetchScalarGridSpec(
            num_scalar_prefetch=0,
            grid=(1,),
            in_specs=[
                pl.BlockSpec((n_split * STAT_ROWS, L), lambda i: (0, 0)),
                pl.BlockSpec((K, L), lambda i: (0, 0)),             # Wz reshaped (K, L)
                pl.BlockSpec((1, 1), lambda i: (0, 0)),             # bz
                pl.BlockSpec((1, C), lambda i: (0, 0)),             # B_hi
                pl.BlockSpec((1, C), lambda i: (0, 0)),             # B_lo
            ],
            out_specs=pl.BlockSpec((1, C), lambda i: (0, 0)),
        ),
        compiler_params=pltpu.CompilerParams(
            dimension_semantics=("arbitrary",),
        ),
    )(stats, params["wz_kl"], params["bz"], params["b_hi"], params["b_lo"])

    return consecutive_prob, params["B"], params["var_scaling"]


def init_params(key, input_size, output_class):
    L, D, K = input_size, 512, 2
    C = output_class
    ks = jax.random.split(key, 8)
    scale = 0.1
    params = {
        "wv": scale * jax.random.normal(ks[0], (L, D), jnp.float32),
        "bv": scale * jax.random.normal(ks[1], (1, D), jnp.float32),
        "wu": scale * jax.random.normal(ks[2], (L, D), jnp.float32),
        "bu": scale * jax.random.normal(ks[3], (1, D), jnp.float32),
        "ww": scale * jax.random.normal(ks[4], (D, K), jnp.float32),
        "bw": scale * jax.random.normal(ks[5], (1, K), jnp.float32),
        # z_u Linear weight (K*L, 1) stored reshaped as (K, L); semantics == flatten(M) @ W.
        "wz_kl": scale * jax.random.normal(ks[6], (K, L), jnp.float32),
        "bz": scale * jax.random.normal(ks[7], (1, 1), jnp.float32),
    }
    # Non-trainable buffers from __init__
    b = 1.0 * (np.arange(C - 1) - np.arange(C - 1).mean())
    B = jnp.asarray(b, dtype=jnp.float32)                            # (C-1,)
    params["B"] = B
    params["var_scaling"] = jnp.zeros((1,), jnp.float32)
    # Boundary-augmented thresholds encoding concat([-inf, z, +inf]) + diff
    params["b_hi"] = jnp.concatenate([B, jnp.array([jnp.inf], jnp.float32)])[None, :]   # (1, C)
    params["b_lo"] = jnp.concatenate([jnp.array([-jnp.inf], jnp.float32), B])[None, :]  # (1, C)
    return params


def reference_forward(x, params, *, match_bf16=False, act_bf16=False):
    """Pure-JAX reference mirroring the PyTorch forward. If match_bf16, the kernel's bf16
    quantization points (x, Wv|Wu, Ww, optionally the activation path) are mimicked."""
    x2d = x[0]
    wv, wu, ww = params["wv"], params["wu"], params["ww"]
    rnd = lambda a: a.astype(jnp.bfloat16).astype(jnp.float32)
    if match_bf16:
        x2d, wv, wu, ww = rnd(x2d), rnd(wv), rnd(wu), rnd(ww)
    h_v = x2d @ wv + params["bv"]
    h_u = x2d @ wu + params["bu"]
    if match_bf16 and act_bf16:
        a_v = rnd(jnp.tanh(rnd(h_v)))
        a_u = rnd(jax.nn.sigmoid(rnd(h_u)))
        gated = rnd(a_v * a_u)
    else:
        a_v = jnp.tanh(h_v)
        a_u = jax.nn.sigmoid(h_u)
        gated = rnd(a_v * a_u) if match_bf16 else a_v * a_u
    a = gated @ ww + params["bw"]                                    # (N, K)
    a = a.T                                                          # (K, N)
    a = jax.nn.softmax(a, axis=1)
    m = a @ x2d                                                      # (K, L)
    m = m.reshape(1, -1)                                             # (1, K*L)
    wz = params["wz_kl"].reshape(-1, 1)
    z_u = m @ wz + params["bz"]                                      # (1, 1)
    z = params["B"][None, :] - z_u                                   # (1, C-1)
    z = jnp.concatenate(
        [jnp.full((1, 1), -jnp.inf), z, jnp.full((1, 1), jnp.inf)], axis=1)
    cdf = jax.nn.sigmoid(z)
    return cdf[:, 1:] - cdf[:, :-1]


if __name__ == "__main__":
    input_size = 128      # L
    output_class = 5      # C
    n_instances = 200     # N (bag size): 2 tiles of 128, last tile partially masked

    key = jax.random.PRNGKey(0)
    k_param, k_x = jax.random.split(key)
    params = init_params(k_param, input_size, output_class)
    x = jax.random.normal(k_x, (1, n_instances, input_size), jnp.float32)

    act_bf16, _, _ = _device_config()

    # Run 1: small tile to exercise the multi-tile / masked-tail path.
    probs, B, var_scaling = gated_attention_forward(x, params, tn=128)
    probs = jax.block_until_ready(probs)
    # Run 2: default tile heuristic (single big tile here).
    probs2, _, _ = gated_attention_forward(x, params)
    probs2 = jax.block_until_ready(probs2)

    ref_matched = reference_forward(x, params, match_bf16=True, act_bf16=act_bf16)
    ref_f32 = reference_forward(x, params, match_bf16=False)

    assert probs.shape == (1, output_class)
    for p_out in (np.asarray(probs), np.asarray(probs2)):
        assert np.allclose(p_out, np.asarray(ref_matched), atol=5e-3, rtol=5e-3)
        assert np.allclose(p_out, np.asarray(ref_f32), atol=5e-2, rtol=5e-2)
        assert abs(float(p_out.sum()) - 1.0) < 1e-4

    print("KERNEL_OK")
</pallas_src>

<mosaic_0001>
module attributes {stable_mosaic.version = 11 : i64} {
  func.func @_partial_kernel(%arg0: i32, %arg1: i32, %arg2: memref<128x128xbf16, #tpu.memory_space<vmem>>, %arg3: memref<128x1024xbf16, #tpu.memory_space<vmem>>, %arg4: memref<1x1024xf32, #tpu.memory_space<vmem>>, %arg5: memref<512x2xbf16, #tpu.memory_space<vmem>>, %arg6: memref<1x2xf32, #tpu.memory_space<vmem>>, %arg7: memref<8x128xf32, #tpu.memory_space<vmem>>, %arg8: memref<1x2xf32, #tpu.memory_space<vmem>>, %arg9: memref<1x2xf32, #tpu.memory_space<vmem>>, %arg10: memref<2x128xf32, #tpu.memory_space<vmem>>) attributes {dimension_semantics = [#tpu.dimension_semantics<parallel>, #tpu.dimension_semantics<arbitrary>], iteration_bounds = array<i64: 1, 2>, scalar_prefetch = 0 : i64, scratch_operands = 3 : i64, tpu.core_type = #tpu.core_type<tc>, window_params = [{transform_indices = @transform_0, window_bounds = array<i64: 128, 128>}, {pipeline_mode = #tpu.pipeline_mode<synchronous>, transform_indices = @transform_1, window_bounds = array<i64: 128, 1024>}, {pipeline_mode = #tpu.pipeline_mode<synchronous>, transform_indices = @transform_2, window_bounds = array<i64: 1, 1024>}, {pipeline_mode = #tpu.pipeline_mode<synchronous>, transform_indices = @transform_3, window_bounds = array<i64: 512, 2>}, {pipeline_mode = #tpu.pipeline_mode<synchronous>, transform_indices = @transform_4, window_bounds = array<i64: 1, 2>}, {transform_indices = @transform_5, window_bounds = array<i64: 8, 128>}]} {
    %c0_i32 = arith.constant 0 : i32
    %0 = arith.cmpi eq, %arg1, %c0_i32 : i32
    %1 = arith.extui %0 : i1 to i32
    %c0_i32_0 = arith.constant 0 : i32
    %2 = arith.cmpi ne, %1, %c0_i32_0 : i32
    scf.if %2 {
      %cst_35 = arith.constant 0xFF800000 : f32
      %82 = vector.broadcast %cst_35 : f32 to vector<1x2xf32>
      %c0_36 = arith.constant 0 : index
      %c0_37 = arith.constant 0 : index
      %83 = vector.load %arg8[%c0_36, %c0_37] : memref<1x2xf32, #tpu.memory_space<vmem>>, vector<1x2xf32>
      tpu.vector_store %arg8[%c0_36, %c0_37], %82 {strides = array<i32>} : memref<1x2xf32, #tpu.memory_space<vmem>>, vector<1x2xf32>,
      %cst_38 = arith.constant 0.000000e+00 : f32
      %84 = vector.broadcast %cst_38 : f32 to vector<1x2xf32>
      %c0_39 = arith.constant 0 : index
      %c0_40 = arith.constant 0 : index
      %85 = vector.load %arg9[%c0_39, %c0_40] : memref<1x2xf32, #tpu.memory_space<vmem>>, vector<1x2xf32>
      tpu.vector_store %arg9[%c0_39, %c0_40], %84 {strides = array<i32>} : memref<1x2xf32, #tpu.memory_space<vmem>>, vector<1x2xf32>,
      %cst_41 = arith.constant 0.000000e+00 : f32
      %86 = vector.broadcast %cst_41 : f32 to vector<2x128xf32>
      %c0_42 = arith.constant 0 : index
      %c0_43 = arith.constant 0 : index
      %87 = vector.load %arg10[%c0_42, %c0_43] : memref<2x128xf32, #tpu.memory_space<vmem>>, vector<2x128xf32>
      tpu.vector_store %arg10[%c0_42, %c0_43], %86 {strides = array<i32>} : memref<2x128xf32, #tpu.memory_space<vmem>>, vector<2x128xf32>,
    } else {
    }
    %c0 = arith.constant 0 : index
    %c0_1 = arith.constant 0 : index
    %3 = vector.load %arg2[%c0, %c0_1] : memref<128x128xbf16, #tpu.memory_space<vmem>>, vector<128x128xbf16>
    %4 = arith.extf %3 : vector<128x128xbf16> to vector<128x128xf32>
    %c0_2 = arith.constant 0 : index
    %c0_3 = arith.constant 0 : index
    %5 = vector.load %arg3[%c0_2, %c0_3] : memref<128x1024xbf16, #tpu.memory_space<vmem>>, vector<128x1024xbf16>
    %cst = arith.constant dense<0.000000e+00> : vector<128x1024xf32>
    %6 = tpu.matmul %3, %5, %cst {dimension_numbers = #tpu.dot_dimension_numbers<[1], [0], [0], [1], [0, 0, 1, 1], [], []>} : vector<128x128xbf16>, vector<128x1024xbf16>, vector<128x1024xf32> -> vector<128x1024xf32>
    %c0_4 = arith.constant 0 : index
    %c0_5 = arith.constant 0 : index
    %7 = vector.load %arg4[%c0_4, %c0_5] : memref<1x1024xf32, #tpu.memory_space<vmem>>, vector<1x1024xf32>
    %8 = vector.broadcast %7 : vector<1x1024xf32> to vector<128x1024xf32>
    %9 = arith.addf %6, %8 : vector<128x1024xf32>
    %10 = arith.truncf %9 : vector<128x1024xf32> to vector<128x1024xbf16>
    %11 = vector.extract_strided_slice %10 {offsets = [0, 0], sizes = [128, 512], strides = [1, 1]} : vector<128x1024xbf16> to vector<128x512xbf16>
    %12 = math.tanh %11 : vector<128x512xbf16>
    %13 = vector.extract_strided_slice %10 {offsets = [0, 512], sizes = [128, 512], strides = [1, 1]} : vector<128x1024xbf16> to vector<128x512xbf16>
    %14 = arith.negf %13 : vector<128x512xbf16>
    %15 = math.exp %14 : vector<128x512xbf16>
    %cst_6 = arith.constant 1.000000e+00 : bf16
    %16 = vector.broadcast %cst_6 : bf16 to vector<128x512xbf16>
    %17 = arith.addf %16, %15 : vector<128x512xbf16>
    %18 = arith.divf %16, %17 : vector<128x512xbf16>
    %19 = arith.mulf %12, %18 : vector<128x512xbf16>
    %c0_7 = arith.constant 0 : index
    %c0_8 = arith.constant 0 : index
    %20 = vector.load %arg5[%c0_7, %c0_8] : memref<512x2xbf16, #tpu.memory_space<vmem>>, vector<512x2xbf16>
    %cst_9 = arith.constant dense<0.000000e+00> : vector<128x2xf32>
    %21 = tpu.matmul %19, %20, %cst_9 {dimension_numbers = #tpu.dot_dimension_numbers<[1], [0], [0], [1], [0, 0, 1, 1], [], []>} : vector<128x512xbf16>, vector<512x2xbf16>, vector<128x2xf32> -> vector<128x2xf32>
    %c0_10 = arith.constant 0 : index
    %c0_11 = arith.constant 0 : index
    %22 = vector.load %arg6[%c0_10, %c0_11] : memref<1x2xf32, #tpu.memory_space<vmem>>, vector<1x2xf32>
    %23 = vector.broadcast %22 : vector<1x2xf32> to vector<128x2xf32>
    %24 = arith.addf %21, %23 : vector<128x2xf32>
    %c2_i32 = arith.constant 2 : i32
    %25 = arith.muli %arg0, %c2_i32 : i32
    %26 = arith.addi %25, %arg1 : i32
    %c128_i32 = arith.constant 128 : i32
    %27 = arith.muli %26, %c128_i32 : i32
    %28 = tpu.iota {dimensions = array<i32: 0>} : vector<128x1xi32>
    %29 = vector.broadcast %27 : i32 to vector<128x1xi32>
    %30 = arith.addi %29, %28 : vector<128x1xi32>
    %c200_i32 = arith.constant 200 : i32
    %31 = vector.broadcast %c200_i32 : i32 to vector<128x1xi32>
    %32 = arith.cmpi slt, %30, %31 : vector<128x1xi32>
    %cst_12 = arith.constant 0xFF800000 : f32
    %33 = vector.shape_cast %32 : vector<128x1xi1> to vector<128x1xi1>
    %34 = vector.broadcast %33 : vector<128x1xi1> to vector<128x2xi1>
    %35 = vector.broadcast %cst_12 : f32 to vector<128x2xf32>
    %36 = arith.select %34, %24, %35 : vector<128x2xi1>, vector<128x2xf32>
    %c0_13 = arith.constant 0 : index
    %c0_14 = arith.constant 0 : index
    %37 = vector.load %arg8[%c0_13, %c0_14] : memref<1x2xf32, #tpu.memory_space<vmem>>, vector<1x2xf32>
    %cst_15 = arith.constant dense<0xFF800000> : vector<2xf32>
    %38 = vector.multi_reduction <maximumf>, %36, %cst_15 [0] : vector<128x2xf32> to vector<2xf32>
    %39 = vector.shape_cast %38 : vector<2xf32> to vector<1x2xf32>
    %40 = arith.maximumf %37, %39 : vector<1x2xf32>
    %cst_16 = arith.constant 0xFF800000 : f32
    %41 = vector.broadcast %cst_16 : f32 to vector<1x2xf32>
    %42 = arith.cmpf oeq, %40, %41 : vector<1x2xf32>
    %cst_17 = arith.constant 0.000000e+00 : f32
    %43 = vector.broadcast %cst_17 : f32 to vector<1x2xf32>
    %44 = arith.select %42, %43, %40 : vector<1x2xi1>, vector<1x2xf32>
    %45 = arith.subf %37, %44 : vector<1x2xf32>
    %46 = math.exp %45 : vector<1x2xf32>
    %47 = vector.broadcast %44 : vector<1x2xf32> to vector<128x2xf32>
    %48 = arith.subf %36, %47 : vector<128x2xf32>
    %49 = math.exp %48 : vector<128x2xf32>
    %c0_18 = arith.constant 0 : index
    %c0_19 = arith.constant 0 : index
    %50 = vector.load %arg9[%c0_18, %c0_19] : memref<1x2xf32, #tpu.memory_space<vmem>>, vector<1x2xf32>
    %51 = arith.mulf %46, %50 : vector<1x2xf32>
    %cst_20 = arith.constant dense<0.000000e+00> : vector<2xf32>
    %52 = vector.multi_reduction <add>, %49, %cst_20 [0] : vector<128x2xf32> to vector<2xf32>
    %53 = vector.shape_cast %52 : vector<2xf32> to vector<1x2xf32>
    %54 = arith.addf %51, %53 : vector<1x2xf32>
    %c0_21 = arith.constant 0 : index
    %c0_22 = arith.constant 0 : index
    %55 = vector.load %arg9[%c0_21, %c0_22] : memref<1x2xf32, #tpu.memory_space<vmem>>, vector<1x2xf32>
    tpu.vector_store %arg9[%c0_21, %c0_22], %54 {strides = array<i32>} : memref<1x2xf32, #tpu.memory_space<vmem>>, vector<1x2xf32>,
    %c0_23 = arith.constant 0 : index
    %c0_24 = arith.constant 0 : index
    %56 = vector.load %arg8[%c0_23, %c0_24] : memref<1x2xf32, #tpu.memory_space<vmem>>, vector<1x2xf32>
    tpu.vector_store %arg8[%c0_23, %c0_24], %40 {strides = array<i32>} : memref<1x2xf32, #tpu.memory_space<vmem>>, vector<1x2xf32>,
    %57 = vector.extract_strided_slice %46 {offsets = [0, 0], sizes = [1, 1], strides = [1, 1]} : vector<1x2xf32> to vector<1x1xf32>
    %58 = vector.extract_strided_slice %49 {offsets = [0, 0], sizes = [128, 1], strides = [1, 1]} : vector<128x2xf32> to vector<128x1xf32>
    %59 = vector.broadcast %58 : vector<128x1xf32> to vector<128x128xf32>
    %60 = arith.mulf %59, %4 : vector<128x128xf32>
    %cst_25 = arith.constant dense<0.000000e+00> : vector<128xf32>
    %61 = vector.multi_reduction <add>, %60, %cst_25 [0] : vector<128x128xf32> to vector<128xf32>
    %62 = vector.shape_cast %61 : vector<128xf32> to vector<1x128xf32>
    %c0_26 = arith.constant 0 : index
    %c0_27 = arith.constant 0 : index
    %63 = vector.load %arg10[%c0_26, %c0_27] : memref<2x128xf32, #tpu.memory_space<vmem>>, vector<1x128xf32>
    %64 = vector.broadcast %57 : vector<1x1xf32> to vector<1x128xf32>
    %65 = arith.mulf %64, %63 : vector<1x128xf32>
    %66 = arith.addf %65, %62 : vector<1x128xf32>
    %c0_28 = arith.constant 0 : index
    %c0_29 = arith.constant 0 : index
    %67 = vector.load %arg10[%c0_28, %c0_29] : memref<2x128xf32, #tpu.memory_space<vmem>>, vector<1x128xf32>
    tpu.vector_store %arg10[%c0_28, %c0_29], %66 {strides = array<i32>} : memref<2x128xf32, #tpu.memory_space<vmem>>, vector<1x128xf32>,
    %68 = vector.extract_strided_slice %46 {offsets = [0, 1], sizes = [1, 1], strides = [1, 1]} : vector<1x2xf32> to vector<1x1xf32>
    %69 = vector.extract_strided_slice %49 {offsets = [0, 1], sizes = [128, 1], strides = [1, 1]} : vector<128x2xf32> to vector<128x1xf32>
    %70 = vector.broadcast %69 : vector<128x1xf32> to vector<128x128xf32>
    %71 = arith.mulf %70, %4 : vector<128x128xf32>
    %cst_30 = arith.constant dense<0.000000e+00> : vector<128xf32>
    %72 = vector.multi_reduction <add>, %71, %cst_30 [0] : vector<128x128xf32> to vector<128xf32>
    %73 = vector.shape_cast %72 : vector<128xf32> to vector<1x128xf32>
    %c1 = arith.constant 1 : index
    %c0_31 = arith.constant 0 : index
    %74 = vector.load %arg10[%c1, %c0_31] : memref<2x128xf32, #tpu.memory_space<vmem>>, vector<1x128xf32>
    %75 = vector.broadcast %68 : vector<1x1xf32> to vector<1x128xf32>
    %76 = arith.mulf %75, %74 : vector<1x128xf32>
    %77 = arith.addf %76, %73 : vector<1x128xf32>
    %c1_32 = arith.constant 1 : index
    %c0_33 = arith.constant 0 : index
    %78 = vector.load %arg10[%c1_32, %c0_33] : memref<2x128xf32, #tpu.memory_space<vmem>>, vector<1x128xf32>
    tpu.vector_store %arg10[%c1_32, %c0_33], %77 {strides = array<i32>} : memref<2x128xf32, #tpu.memory_space<vmem>>, vector<1x128xf32>,
    %c1_i32 = arith.constant 1 : i32
    %79 = arith.cmpi eq, %arg1, %c1_i32 : i32
    %80 = arith.extui %79 : i1 to i32
    %c0_i32_34 = arith.constant 0 : i32
    %81 = arith.cmpi ne, %80, %c0_i32_34 : i32
    scf.if %81 {
      %cst_35 = arith.constant 1.000000e+00 : f32
      %82 = vector.broadcast %cst_35 : f32 to vector<1x128xf32>
      %c0_36 = arith.constant 0 : index
      %c0_37 = arith.constant 0 : index
      %83 = vector.load %arg10[%c0_36, %c0_37] : memref<2x128xf32, #tpu.memory_space<vmem>>, vector<2x128xf32>
      %c0_38 = arith.constant 0 : index
      %c0_39 = arith.constant 0 : index
      %84 = vector.load %arg7[%c0_38, %c0_39] : memref<8x128xf32, #tpu.memory_space<vmem>>, vector<2x128xf32>
      tpu.vector_store %arg7[%c0_38, %c0_39], %83 {strides = array<i32>} : memref<8x128xf32, #tpu.memory_space<vmem>>, vector<2x128xf32>,
      %c0_40 = arith.constant 0 : index
      %c0_41 = arith.constant 0 : index
      %85 = vector.load %arg8[%c0_40, %c0_41] : memref<1x2xf32, #tpu.memory_space<vmem>>, vector<1x2xf32>
      %c0_42 = arith.constant 0 : index
      %c0_43 = arith.constant 0 : index
      %86 = vector.load %arg9[%c0_42, %c0_43] : memref<1x2xf32, #tpu.memory_space<vmem>>, vector<1x2xf32>
      %87 = vector.extract_strided_slice %85 {offsets = [0, 0], sizes = [1, 1], strides = [1, 1]} : vector<1x2xf32> to vector<1x1xf32>
      %88 = vector.broadcast %87 : vector<1x1xf32> to vector<1x128xf32>
      %89 = arith.mulf %88, %82 : vector<1x128xf32>
      %c2 = arith.constant 2 : index
      %c0_44 = arith.constant 0 : index
      %90 = vector.load %arg7[%c2, %c0_44] : memref<8x128xf32, #tpu.memory_space<vmem>>, vector<1x128xf32>
      tpu.vector_store %arg7[%c2, %c0_44], %89 {strides = array<i32>} : memref<8x128xf32, #tpu.memory_space<vmem>>, vector<1x128xf32>,
      %91 = vector.extract_strided_slice %86 {offsets = [0, 0], sizes = [1, 1], strides = [1, 1]} : vector<1x2xf32> to vector<1x1xf32>
      %92 = vector.broadcast %91 : vector<1x1xf32> to vector<1x128xf32>
      %93 = arith.mulf %92, %82 : vector<1x128xf32>
      %c4 = arith.constant 4 : index
      %c0_45 = arith.constant 0 : index
      %94 = vector.load %arg7[%c4, %c0_45] : memref<8x128xf32, #tpu.memory_space<vmem>>, vector<1x128xf32>
      tpu.vector_store %arg7[%c4, %c0_45], %93 {strides = array<i32>} : memref<8x128xf32, #tpu.memory_space<vmem>>, vector<1x128xf32>,
      %95 = vector.extract_strided_slice %85 {offsets = [0, 1], sizes = [1, 1], strides = [1, 1]} : vector<1x2xf32> to vector<1x1xf32>
      %96 = vector.broadcast %95 : vector<1x1xf32> to vector<1x128xf32>
      %97 = arith.mulf %96, %82 : vector<1x128xf32>
      %c3 = arith.constant 3 : index
      %c0_46 = arith.constant 0 : index
      %98 = vector.load %arg7[%c3, %c0_46] : memref<8x128xf32, #tpu.memory_space<vmem>>, vector<1x128xf32>
      tpu.vector_store %arg7[%c3, %c0_46], %97 {strides = array<i32>} : memref<8x128xf32, #tpu.memory_space<vmem>>, vector<1x128xf32>,
      %99 = vector.extract_strided_slice %86 {offsets = [0, 1], sizes = [1, 1], strides = [1, 1]} : vector<1x2xf32> to vector<1x1xf32>
      %100 = vector.broadcast %99 : vector<1x1xf32> to vector<1x128xf32>
      %101 = arith.mulf %100, %82 : vector<1x128xf32>
      %c5 = arith.constant 5 : index
      %c0_47 = arith.constant 0 : index
      %102 = vector.load %arg7[%c5, %c0_47] : memref<8x128xf32, #tpu.memory_space<vmem>>, vector<1x128xf32>
      tpu.vector_store %arg7[%c5, %c0_47], %101 {strides = array<i32>} : memref<8x128xf32, #tpu.memory_space<vmem>>, vector<1x128xf32>,
      %cst_48 = arith.constant 0.000000e+00 : f32
      %103 = vector.broadcast %cst_48 : f32 to vector<2x128xf32>
      %c6 = arith.constant 6 : index
      %c0_49 = arith.constant 0 : index
      %104 = vector.load %arg7[%c6, %c0_49] : memref<8x128xf32, #tpu.memory_space<vmem>>, vector<2x128xf32>
      tpu.vector_store %arg7[%c6, %c0_49], %103 {strides = array<i32>} : memref<8x128xf32, #tpu.memory_space<vmem>>, vector<2x128xf32>,
    } else {
    }
    return
  }
  func.func @transform_0(%arg0: i32, %arg1: i32) -> (i32, i32) {
    %c2_i32 = arith.constant 2 : i32
    %0 = arith.muli %arg0, %c2_i32 : i32
    %1 = arith.addi %0, %arg1 : i32
    %c0_i32 = arith.constant 0 : i32
    %c0_i32_0 = arith.constant 0 : i32
    return %1, %c0_i32 : i32, i32
  }
  func.func @transform_1(%arg0: i32, %arg1: i32) -> (i32, i32) {
    %c0_i32 = arith.constant 0 : i32
    %c0_i32_0 = arith.constant 0 : i32
    %c0_i32_1 = arith.constant 0 : i32
    return %c0_i32, %c0_i32_0 : i32, i32
  }
  func.func @transform_2(%arg0: i32, %arg1: i32) -> (i32, i32) {
    %c0_i32 = arith.constant 0 : i32
    %c0_i32_0 = arith.constant 0 : i32
    %c0_i32_1 = arith.constant 0 : i32
    return %c0_i32, %c0_i32_0 : i32, i32
  }
  func.func @transform_3(%arg0: i32, %arg1: i32) -> (i32, i32) {
    %c0_i32 = arith.constant 0 : i32
    %c0_i32_0 = arith.constant 0 : i32
    %c0_i32_1 = arith.constant 0 : i32
    return %c0_i32, %c0_i32_0 : i32, i32
  }
  func.func @transform_4(%arg0: i32, %arg1: i32) -> (i32, i32) {
    %c0_i32 = arith.constant 0 : i32
    %c0_i32_0 = arith.constant 0 : i32
    %c0_i32_1 = arith.constant 0 : i32
    return %c0_i32, %c0_i32_0 : i32, i32
  }
  func.func @transform_5(%arg0: i32, %arg1: i32) -> (i32, i32) {
    %c0_i32 = arith.constant 0 : i32
    %c0_i32_0 = arith.constant 0 : i32
    return %arg0, %c0_i32 : i32, i32
  }
}

</mosaic_0001>

<llo_original>
// kernel: tpu_custom_call.1
$region0: #{tpu_custom_call.1}
  #allocation0 [shape = 'u32[]', space=smem, size = 0x4, offset = 0x4, fixed_abs, tag = 'smem constant byte address 0x4 - core index']
  #allocation1 [shape = 'u32[144,128]{1,0:T(1,128)}', space=vmem, size = 0x12000, scoped, tag = 'internal scratch']
  #allocation2 [shape = 'f32[1,2]{1,0:T(1,128)}', space=vmem, size = 0x200, scoped, tag = 'scratch operand']
  #allocation3 [shape = 'f32[1,2]{1,0:T(1,128)}', space=vmem, size = 0x200, scoped, tag = 'scratch operand']
  #allocation4 [shape = 'f32[2,128]{1,0:T(2,128)}', space=vmem, size = 0x400, scoped, tag = 'scratch operand']
  %s0 = inlined_call_operand.hbm [shape: bf16[256,128], index: 0, kind: input, shape index: {}]
  %s1 = inlined_call_operand.hbm [shape: bf16[128,1024], index: 1, kind: input, shape index: {}]
  %s2 = inlined_call_operand.hbm [shape: f32[1,1024], index: 2, kind: input, shape index: {}]
  %s3 = inlined_call_operand.hbm [shape: bf16[512,2], index: 3, kind: input, shape index: {}]
  %s4 = inlined_call_operand.hbm [shape: f32[1,2], index: 4, kind: input, shape index: {}]
  %s5 = inlined_call_operand.hbm [shape: f32[8,128], index: 5, kind: output, shape index: {}]
  %s6 = sld [smem:[#allocation0]]
  $region81: #{tpu_custom_call.1} parent=0
    _
  %s8 = ssub.s32 1, %s6
  %s9 = scalar_select 0, %s8, %s6
  $region1: #{tpu_custom_call.1} parent=0
    #allocation5 [shape = 'u8[65536]{0}', space=vmem, size = 0x10000, scoped, tag = 'input window, operand 0']
    #allocation6 [shape = 's32[2]{0}', space=sflag, size = 0x8, scoped, tag = 'scoped memory for tpu_custom_call.1']
    #allocation7 [shape = 's32[2]{0}', space=sflag, size = 0x8, scoped, tag = 'scoped memory for tpu_custom_call.1']
    #allocation8 [shape = 'u8[262144]{0}', space=vmem, size = 0x40000, scoped, tag = 'input window, operand 1, single buffered']
    #allocation9 [shape = 's32[1]{0}', space=sflag, size = 0x4, scoped, tag = 'scoped memory for tpu_custom_call.1']
    #allocation10 [shape = 'u8[4096]{0}', space=vmem, size = 0x1000, scoped, tag = 'input window, operand 2, single buffered']
    #allocation11 [shape = 'u8[131072]{0}', space=vmem, size = 0x20000, scoped, tag = 'input window, operand 3, single buffered']
    #allocation12 [shape = 's32[1]{0}', space=sflag, size = 0x4, scoped, tag = 'scoped memory for tpu_custom_call.1']
    #allocation13 [shape = 'u8[512]{0}', space=vmem, size = 0x400, scoped, tag = 'input window, operand 4, single buffered']
    #allocation14 [shape = 'u8[4096]{0}', space=vmem, size = 0x1000, scoped, tag = 'output window, operand 0, single buffered']
    %10 = vsyncpa [#allocation6], 0
    %s11 = scalar_lea.sflag [#allocation6], 1
    %12 = vsyncpa %s11, 0
    %13 = vsyncpa [#allocation9], 0
    %14 = vsyncpa [#allocation12], 0
    %15 = vsyncpa [#allocation7], 0
    loop: start=0, step=1, limit=4
    $region2: #{tpu_custom_call.1} parent=1 // loop_pre_header
      _
    $region3: #{tpu_custom_call.1} parent=1 // loop_header
      %s17 = sphi 0, %s21
      %p18 = scmp.ge.s32.totalorder %s17, 4
      %s24 = sphi 0, %s36
      %s25 = sphi 0, %s32
      %s26 = sphi 0, %s24
      %s27 = sphi 0, %s25
      %s28 = sphi 0, %s26
      %s29 = sphi 0, %s27
      %s43 = sphi 0, %s45
      %s46 = sphi 0, %s43
      %s47 = sphi 0, %s46
      %s63 = sphi 0, %s47
      %s67 = sphi 0, %s67
      %s69 = sphi 0, %s67
      %s70 = sphi 0, %s69
      %s84 = sphi 0, %s70
      %s88 = sphi 0, %s88
      %s90 = sphi 0, %s88
      %s91 = sphi 0, %s90
      %s105 = sphi 0, %s91
      %s109 = sphi 0, %s109
      %s111 = sphi 0, %s109
      %s112 = sphi 0, %s111
      %s126 = sphi 0, %s112
      %s130 = sphi 0, %s130
      %s132 = sphi 0, %s130
      %s133 = sphi 0, %s132
      %s147 = sphi 0, %s133
      %s153 = sphi 0, %s155
      %s156 = sphi 0, %s153
      %s157 = sphi 0, %s156
      %s173 = sphi 0, %s157
    $region4: #{tpu_custom_call.1} parent=1 // loop_header_branch
      %20 = sbr.rel (%p18) target = $region8
    $region5: #{tpu_custom_call.1} parent=1 // loop_body
      %s22 = ssub.s32 %s17, 1
      %s23 = ssub.s32 %s17, 2
      %s30 = sadd.s32 1, %s25
      %p31 = scmp.ge.s32.totalorder %s30, 2
      %s32 = scalar_select %p31, 0, %s30
      %s33 = sadd.s32 1, %s24
      %s34 = scalar_select %p31, %s33, %s24
      %p35 = scmp.ge.s32.totalorder %s34, 1
      %s36 = scalar_select %p35, 0, %s34
      %s37 = smul.u32 %s24, 2
      %s38 = sadd.s32 %s37, %s25
      %s39 = smul.u32 %s36, 2
      %s40 = sadd.s32 %s39, %s32
      %s41 = ssub.s32 %s38, %s40
      %p42 = scmp.eq.s32.totalorder %s41, 0
      %s44 = sadd.s32 %s43, 1
      %s45 = scalar_select %p42, %s43, %s44
      %p48 = pneg %p42
      %p49 = scmp.eq.s32.totalorder %s17, 1
      %p50 = por %p48, %p49
      %p51 = scmp.ne.s32.totalorder %s43, %s46
      %p52 = scmp.eq.s32.totalorder %s17, 0
      %p53 = por %p51, %p52
      %p54 = scmp.ne.s32.totalorder %s43, %s46
      %p55 = scmp.eq.s32.totalorder %s22, 1
      %p56 = por %p54, %p55
      %p57 = scmp.ne.s32.totalorder %s46, %s47
      %p58 = scmp.eq.s32.totalorder %s22, 0
      %p59 = por %p57, %p58
      %p60 = scmp.ne.s32.totalorder %s46, %s47
      %p61 = scmp.eq.s32.totalorder %s23, 1
      %p62 = por %p60, %p61
      %p64 = scmp.ne.s32.totalorder %s47, %s63
      %p65 = scmp.eq.s32.totalorder %s23, 0
      %p66 = por %p64, %p65
      %s68 = sadd.s32 %s67, 1
      %p71 = scmp.eq.s32.totalorder %s17, 1
      %p72 = scmp.ne.s32.totalorder %s67, %s69
      %p73 = scmp.eq.s32.totalorder %s17, 0
      %p74 = por %p72, %p73
      %p75 = scmp.ne.s32.totalorder %s67, %s69
      %p76 = scmp.eq.s32.totalorder %s22, 1
      %p77 = por %p75, %p76
      %p78 = scmp.ne.s32.totalorder %s69, %s70
      %p79 = scmp.eq.s32.totalorder %s22, 0
      %p80 = por %p78, %p79
      %p81 = scmp.ne.s32.totalorder %s69, %s70
      %p82 = scmp.eq.s32.totalorder %s23, 1
      %p83 = por %p81, %p82
      %p85 = scmp.ne.s32.totalorder %s70, %s84
      %p86 = scmp.eq.s32.totalorder %s23, 0
      %p87 = por %p85, %p86
      %s89 = sadd.s32 %s88, 1
      %p92 = scmp.eq.s32.totalorder %s17, 1
      %p93 = scmp.ne.s32.totalorder %s88, %s90
      %p94 = scmp.eq.s32.totalorder %s17, 0
      %p95 = por %p93, %p94
      %p96 = scmp.ne.s32.totalorder %s88, %s90
      %p97 = scmp.eq.s32.totalorder %s22, 1
      %p98 = por %p96, %p97
      %p99 = scmp.ne.s32.totalorder %s90, %s91
      %p100 = scmp.eq.s32.totalorder %s22, 0
      %p101 = por %p99, %p100
      %p102 = scmp.ne.s32.totalorder %s90, %s91
      %p103 = scmp.eq.s32.totalorder %s23, 1
      %p104 = por %p102, %p103
      %p106 = scmp.ne.s32.totalorder %s91, %s105
      %p107 = scmp.eq.s32.totalorder %s23, 0
      %p108 = por %p106, %p107
      %s110 = sadd.s32 %s109, 1
      %p113 = scmp.eq.s32.totalorder %s17, 1
      %p114 = scmp.ne.s32.totalorder %s109, %s111
      %p115 = scmp.eq.s32.totalorder %s17, 0
      %p116 = por %p114, %p115
      %p117 = scmp.ne.s32.totalorder %s109, %s111
      %p118 = scmp.eq.s32.totalorder %s22, 1
      %p119 = por %p117, %p118
      %p120 = scmp.ne.s32.totalorder %s111, %s112
      %p121 = scmp.eq.s32.totalorder %s22, 0
      %p122 = por %p120, %p121
      %p123 = scmp.ne.s32.totalorder %s111, %s112
      %p124 = scmp.eq.s32.totalorder %s23, 1
      %p125 = por %p123, %p124
      %p127 = scmp.ne.s32.totalorder %s112, %s126
      %p128 = scmp.eq.s32.totalorder %s23, 0
      %p129 = por %p127, %p128
      %s131 = sadd.s32 %s130, 1
      %p134 = scmp.eq.s32.totalorder %s17, 1
      %p135 = scmp.ne.s32.totalorder %s130, %s132
      %p136 = scmp.eq.s32.totalorder %s17, 0
      %p137 = por %p135, %p136
      %p138 = scmp.ne.s32.totalorder %s130, %s132
      %p139 = scmp.eq.s32.totalorder %s22, 1
      %p140 = por %p138, %p139
      %p141 = scmp.ne.s32.totalorder %s132, %s133
      %p142 = scmp.eq.s32.totalorder %s22, 0
      %p143 = por %p141, %p142
      %p144 = scmp.ne.s32.totalorder %s132, %s133
      %p145 = scmp.eq.s32.totalorder %s23, 1
      %p146 = por %p144, %p145
      %p148 = scmp.ne.s32.totalorder %s133, %s147
      %p149 = scmp.eq.s32.totalorder %s23, 0
      %p150 = por %p148, %p149
      %s151 = ssub.s32 %s24, %s36
      %p152 = scmp.eq.s32.totalorder %s151, 0
      %s154 = sadd.s32 %s153, 1
      %s155 = scalar_select %p152, %s153, %s154
      %p158 = pneg %p152
      %p159 = scmp.eq.s32.totalorder %s17, 1
      %p160 = por %p158, %p159
      %p161 = scmp.ne.s32.totalorder %s153, %s156
      %p162 = scmp.eq.s32.totalorder %s17, 0
      %p163 = por %p161, %p162
      %p164 = scmp.ne.s32.totalorder %s153, %s156
      %p165 = scmp.eq.s32.totalorder %s22, 1
      %p166 = por %p164, %p165
      %p167 = scmp.ne.s32.totalorder %s156, %s157
      %p168 = scmp.eq.s32.totalorder %s22, 0
      %p169 = por %p167, %p168
      %p170 = scmp.ne.s32.totalorder %s156, %s157
      %p171 = scmp.eq.s32.totalorder %s23, 1
      %p172 = por %p170, %p171
      %p174 = scmp.ne.s32.totalorder %s157, %s173
      %p175 = scmp.eq.s32.totalorder %s23, 0
      %p176 = por %p174, %p175
      %p177 = scmp.le.s32.totalorder 1, %s17
      %p178 = scmp.lt.s32.totalorder %s17, 3
      %p179 = pnand %p177, %p178
      %p180 = pneg %p179
      // Predicated region
      $region9: #{tpu_custom_call.1} parent=5 // pred_check
        _
      $region10: #{tpu_custom_call.1} parent=5 // pred_check_branch
        %182 = sbr.rel (%p179) target = $region12
      $region11: #{tpu_custom_call.1} parent=5 // pred_region
        %s183 = ssub.s32 %s17, 1
        // Predicated region
        $region13: #{tpu_custom_call.1} parent=11 // pred_check
          %p184 = pneg %p80
        $region14: #{tpu_custom_call.1} parent=11 // pred_check_branch
          %186 = sbr.rel (%p184) target = $region16
        $region15: #{tpu_custom_call.1} parent=11 // pred_region
          %s188 = ssub.s32 8192, 8192
          %189 = vsyncadd [#allocation9], %s188
          %s190 = sshll.u32 [#allocation8], 4
          %s191 = int_to_ptr.vmem [resolvable:$true] %s190
          %196 = dma.hbm_to_vmem [thread:$0]  %s1, 8192, %s191, [#allocation9], 512, 512, 32
        $region16: #{tpu_custom_call.1} parent=11 // pred_fallthru
          _
        // Predicated region
        $region17: #{tpu_custom_call.1} parent=11 // pred_check
          %p197 = pneg %p101
        $region18: #{tpu_custom_call.1} parent=11 // pred_check_branch
          %199 = sbr.rel (%p197) target = $region20
        $region19: #{tpu_custom_call.1} parent=11 // pred_region
          %s201 = ssub.s32 128, 128
          %202 = vsyncadd [#allocation9], %s201
          %s204 = sshll.u32 [#allocation10], 4
          %s205 = int_to_ptr.vmem [resolvable:$true] %s204
          %207 = dma.hbm_to_vmem [thread:$0]  %s2, 128, %s205, [#allocation9]
        $region20: #{tpu_custom_call.1} parent=11 // pred_fallthru
          _
        // Predicated region
        $region21: #{tpu_custom_call.1} parent=11 // pred_check
          %p208 = pneg %p122
        $region22: #{tpu_custom_call.1} parent=11 // pred_check_branch
          %210 = sbr.rel (%p208) target = $region24
        $region23: #{tpu_custom_call.1} parent=11 // pred_region
          %s212 = ssub.s32 4096, 4096
          %213 = vsyncadd [#allocation12], %s212
          %s214 = sshll.u32 [#allocation11], 4
          %s215 = int_to_ptr.vmem [resolvable:$true] %s214
          %220 = dma.hbm_to_vmem [thread:$0]  %s3, 4096, %s215, [#allocation12], 64, 64, 4
        $region24: #{tpu_custom_call.1} parent=11 // pred_fallthru
          _
        // Predicated region
        $region25: #{tpu_custom_call.1} parent=11 // pred_check
          %p221 = pneg %p143
        $region26: #{tpu_custom_call.1} parent=11 // pred_check_branch
          %223 = sbr.rel (%p221) target = $region28
        $region27: #{tpu_custom_call.1} parent=11 // pred_region
          %s225 = ssub.s32 16, 16
          %226 = vsyncadd [#allocation12], %s225
          %s228 = sshll.u32 [#allocation13], 4
          %s229 = int_to_ptr.vmem [resolvable:$true] %s228
          %231 = dma.hbm_to_vmem [thread:$0]  %s4, 16, %s229, [#allocation12]
        $region28: #{tpu_custom_call.1} parent=11 // pred_fallthru
          _
      $region12: #{tpu_custom_call.1} parent=5 // pred_fallthru
        _
      %p232 = scmp.lt.s32.totalorder %s17, 2
      // Predicated region
      $region29: #{tpu_custom_call.1} parent=5 // pred_check
        %p233 = pneg %p232
      $region30: #{tpu_custom_call.1} parent=5 // pred_check_branch
        %235 = sbr.rel (%p233) target = $region32
      $region31: #{tpu_custom_call.1} parent=5 // pred_region
        // Predicated region
        $region33: #{tpu_custom_call.1} parent=31 // pred_check
          %p236 = pneg %p53
        $region34: #{tpu_custom_call.1} parent=31 // pred_check_branch
          %238 = sbr.rel (%p236) target = $region36
        $region35: #{tpu_custom_call.1} parent=31 // pred_region
          %s239 = sand.u32 %s43, 1
          %s240 = scalar_lea.sflag [#allocation6], %s239
          %s241 = sand.u32 %s43, 1
          %s242 = smul.addr %s241, 64
          %s243 = scalar_lea.vmem [#allocation5], %s242
          %s244 = smul.u32 %s24, 2
          %s245 = sadd.s32 %s244, %s25
          %s246 = smul.u32 16, %s245
          %s248 = ssub.s32 1024, 1024
          %249 = vsyncadd %s240, %s248
          %s250 = smul.addr %s246, 64
          %s251 = scalar_lea.hbm %s0, %s250
          %s252 = sshll.u32 %s243, 4
          %s253 = int_to_ptr.vmem [resolvable:$true] %s252
          %258 = dma.hbm_to_vmem [thread:$0]  %s251, 1024, %s253, %s240, 64, 64, 4
        $region36: #{tpu_custom_call.1} parent=31 // pred_fallthru
          _
      $region32: #{tpu_custom_call.1} parent=5 // pred_fallthru
        _
      %p259 = scmp.le.s32.totalorder 1, %s17
      %p260 = scmp.lt.s32.totalorder %s17, 3
      %p261 = pnand %p259, %p260
      %p262 = pneg %p261
      // Predicated region
      $region37: #{tpu_custom_call.1} parent=5 // pred_check
        _
      $region38: #{tpu_custom_call.1} parent=5 // pred_check_branch
        %264 = sbr.rel (%p261) target = $region40
      $region39: #{tpu_custom_call.1} parent=5 // pred_region
        %s265 = ssub.s32 %s17, 1
        %s266 = sand.u32 %s46, 1
        %s267 = scalar_lea.sflag [#allocation6], %s266
        %s268 = sand.u32 %s46, 1
        %s269 = smul.addr %s268, 64
        %s270 = scalar_lea.vmem [#allocation5], %s269
        // Predicated region
        $region41: #{tpu_custom_call.1} parent=39 // pred_check
          %p271 = pneg %p59
        $region42: #{tpu_custom_call.1} parent=39 // pred_check_branch
          %273 = sbr.rel (%p271) target = $region44
        $region43: #{tpu_custom_call.1} parent=39 // pred_region
          %274 = dma.done %s267, 1024
        $region44: #{tpu_custom_call.1} parent=39 // pred_fallthru
          _
        // Predicated region
        $region45: #{tpu_custom_call.1} parent=39 // pred_check
          %p275 = pneg %p80
        $region46: #{tpu_custom_call.1} parent=39 // pred_check_branch
          %277 = sbr.rel (%p275) target = $region48
        $region47: #{tpu_custom_call.1} parent=39 // pred_region
          %278 = dma.done [#allocation9], 8192
        $region48: #{tpu_custom_call.1} parent=39 // pred_fallthru
          _
        // Predicated region
        $region49: #{tpu_custom_call.1} parent=39 // pred_check
          %p279 = pneg %p101
        $region50: #{tpu_custom_call.1} parent=39 // pred_check_branch
          %281 = sbr.rel (%p279) target = $region52
        $region51: #{tpu_custom_call.1} parent=39 // pred_region
          %282 = dma.done [#allocation9], 128
        $region52: #{tpu_custom_call.1} parent=39 // pred_fallthru
          _
        // Predicated region
        $region53: #{tpu_custom_call.1} parent=39 // pred_check
          %p283 = pneg %p122
        $region54: #{tpu_custom_call.1} parent=39 // pred_check_branch
          %285 = sbr.rel (%p283) target = $region56
        $region55: #{tpu_custom_call.1} parent=39 // pred_region
          %286 = dma.done [#allocation12], 4096
        $region56: #{tpu_custom_call.1} parent=39 // pred_fallthru
          _
        // Predicated region
        $region57: #{tpu_custom_call.1} parent=39 // pred_check
          %p287 = pneg %p143
        $region58: #{tpu_custom_call.1} parent=39 // pred_check_branch
          %289 = sbr.rel (%p287) target = $region60
        $region59: #{tpu_custom_call.1} parent=39 // pred_region
          %290 = dma.done [#allocation12], 16
        $region60: #{tpu_custom_call.1} parent=39 // pred_fallthru
          _
        %s291 = sand.u32 %s46, 1
        %s292 = scalar_lea.sflag [#allocation6], %s291
        %s293 = sand.u32 %s46, 1
        %s294 = smul.addr %s293, 64
        %s295 = scalar_lea.vmem [#allocation5], %s294
        %p296 = pneg %p59
        %p297 = pneg %p56
        %p298 = pneg %p80
        %p299 = pneg %p77
        %p300 = pneg %p101
        %p301 = pneg %p98
        %p302 = pneg %p122
        %p303 = pneg %p119
        %p304 = pneg %p143
        %p305 = pneg %p140
        %p306 = pneg %p169
        %p307 = pneg %p166
        %s308 = smul.u32 %s26, 2
        %s309 = sadd.s32 %s308, %s27
        %s310 = smul.u32 16, %s309
        %p313 = scmp.eq.s32.totalorder %s27, 0
        // Predicated region
        $region61: #{tpu_custom_call.1} parent=39 // pred_check
          %p314 = pneg %p313
        $region62: #{tpu_custom_call.1} parent=39 // pred_check_branch
          %316 = sbr.rel (%p314) target = $region64
        $region63: #{tpu_custom_call.1} parent=39 // pred_region
          %vm317 = vcmask 8192
          %318 = vst.msk [vmem:[#allocation2] sm:$0x1] %vm317, -inf
          %319 = vst.msk [vmem:[#allocation3] sm:$0x1] %vm317, 0.0
          %320 = vst [vmem:[#allocation4] sm:$0x3] 0.0
        $region64: #{tpu_custom_call.1} parent=39 // pred_fallthru
          _
        %v321 = vld [vmem:[%s270] sm:$0xf]
        %v322 = vld [vmem:[%s270 + $0x4] sm:$0xf]
        %v323 = vld [vmem:[%s270 + $0x8] sm:$0xf]
        %v324 = vld [vmem:[%s270 + $0xc] sm:$0xf]
        %v325 = vld [vmem:[%s270 + $0x10] sm:$0xf]
        %v326 = vld [vmem:[%s270 + $0x14] sm:$0xf]
        %v327 = vld [vmem:[%s270 + $0x18] sm:$0xf]
        %v328 = vld [vmem:[%s270 + $0x1c] sm:$0xf]
        %v329 = vld [vmem:[%s270 + $0x20] sm:$0xf]
        %v330 = vld [vmem:[%s270 + $0x24] sm:$0xf]
        %v331 = vld [vmem:[%s270 + $0x28] sm:$0xf]
        %v332 = vld [vmem:[%s270 + $0x2c] sm:$0xf]
        %v333 = vld [vmem:[%s270 + $0x30] sm:$0xf]
        %v334 = vld [vmem:[%s270 + $0x34] sm:$0xf]
        %v335 = vld [vmem:[%s270 + $0x38] sm:$0xf]
        %v336 = vld [vmem:[%s270 + $0x3c] sm:$0xf]
        %v337 = vunpack.c.l.bf16 %v321
        %v338 = vunpack.c.l.bf16 %v322
        %v339 = vunpack.c.l.bf16 %v323
        %v340 = vunpack.c.l.bf16 %v324
        %v341 = vunpack.c.l.bf16 %v325
        %v342 = vunpack.c.l.bf16 %v326
        %v343 = vunpack.c.l.bf16 %v327
        %v344 = vunpack.c.l.bf16 %v328
        %v345 = vunpack.c.l.bf16 %v329
        %v346 = vunpack.c.l.bf16 %v330
        %v347 = vunpack.c.l.bf16 %v331
        %v348 = vunpack.c.l.bf16 %v332
        %v349 = vunpack.c.l.bf16 %v333
        %v350 = vunpack.c.l.bf16 %v334
        %v351 = vunpack.c.l.bf16 %v335
        %v352 = vunpack.c.l.bf16 %v336
        %v353 = vld [vmem:[#allocation8] sm:$0xff]
        %v354 = vld [vmem:[#allocation8 + $0x8] sm:$0xff]
        %v355 = vld [vmem:[#allocation8 + $0x10] sm:$0xff]
        %v356 = vld [vmem:[#allocation8 + $0x18] sm:$0xff]
        %v357 = vld [vmem:[#allocation8 + $0x20] sm:$0xff]
        %v358 = vld [vmem:[#allocation8 + $0x28] sm:$0xff]
        %v359 = vld [vmem:[#allocation8 + $0x30] sm:$0xff]
        %v360 = vld [vmem:[#allocation8 + $0x38] sm:$0xff]
        %v361 = vld [vmem:[#allocation8 + $0x40] sm:$0xff]
        %v362 = vld [vmem:[#allocation8 + $0x48] sm:$0xff]
        %v363 = vld [vmem:[#allocation8 + $0x50] sm:$0xff]
        %v364 = vld [vmem:[#allocation8 + $0x58] sm:$0xff]
        %v365 = vld [vmem:[#allocation8 + $0x60] sm:$0xff]
        %v366 = vld [vmem:[#allocation8 + $0x68] sm:$0xff]
        %v367 = vld [vmem:[#allocation8 + $0x70] sm:$0xff]
        %v368 = vld [vmem:[#allocation8 + $0x78] sm:$0xff]
        %v369 = vld [vmem:[#allocation8 + $0x80] sm:$0xff]
        %v370 = vld [vmem:[#allocation8 + $0x88] sm:$0xff]
        %v371 = vld [vmem:[#allocation8 + $0x90] sm:$0xff]
        %v372 = vld [vmem:[#allocation8 + $0x98] sm:$0xff]
        %v373 = vld [vmem:[#allocation8 + $0xa0] sm:$0xff]
        %v374 = vld [vmem:[#allocation8 + $0xa8] sm:$0xff]
        %v375 = vld [vmem:[#allocation8 + $0xb0] sm:$0xff]
        %v376 = vld [vmem:[#allocation8 + $0xb8] sm:$0xff]
        %v377 = vld [vmem:[#allocation8 + $0xc0] sm:$0xff]
        %v378 = vld [vmem:[#allocation8 + $0xc8] sm:$0xff]
        %v379 = vld [vmem:[#allocation8 + $0xd0] sm:$0xff]
        %v380 = vld [vmem:[#allocation8 + $0xd8] sm:$0xff]
        %v381 = vld [vmem:[#allocation8 + $0xe0] sm:$0xff]
        %v382 = vld [vmem:[#allocation8 + $0xe8] sm:$0xff]
        %v383 = vld [vmem:[#allocation8 + $0xf0] sm:$0xff]
        %v384 = vld [vmem:[#allocation8 + $0xf8] sm:$0xff]
        %v385 = vld [vmem:[#allocation8 + $0x100] sm:$0xff]
        %v386 = vld [vmem:[#allocation8 + $0x108] sm:$0xff]
        %v387 = vld [vmem:[#allocation8 + $0x110] sm:$0xff]
        %v388 = vld [vmem:[#allocation8 + $0x118] sm:$0xff]
        %v389 = vld [vmem:[#allocation8 + $0x120] sm:$0xff]
        %v390 = vld [vmem:[#allocation8 + $0x128] sm:$0xff]
        %v391 = vld [vmem:[#allocation8 + $0x130] sm:$0xff]
        %v392 = vld [vmem:[#allocation8 + $0x138] sm:$0xff]
        %v393 = vld [vmem:[#allocation8 + $0x140] sm:$0xff]
        %v394 = vld [vmem:[#allocation8 + $0x148] sm:$0xff]
        %v395 = vld [vmem:[#allocation8 + $0x150] sm:$0xff]
        %v396 = vld [vmem:[#allocation8 + $0x158] sm:$0xff]
        %v397 = vld [vmem:[#allocation8 + $0x160] sm:$0xff]
        %v398 = vld [vmem:[#allocation8 + $0x168] sm:$0xff]
        %v399 = vld [vmem:[#allocation8 + $0x170] sm:$0xff]
        %v400 = vld [vmem:[#allocation8 + $0x178] sm:$0xff]
        %v401 = vld [vmem:[#allocation8 + $0x180] sm:$0xff]
        %v402 = vld [vmem:[#allocation8 + $0x188] sm:$0xff]
        %v403 = vld [vmem:[#allocation8 + $0x190] sm:$0xff]
        %v404 = vld [vmem:[#allocation8 + $0x198] sm:$0xff]
        %v405 = vld [vmem:[#allocation8 + $0x1a0] sm:$0xff]
        %v406 = vld [vmem:[#allocation8 + $0x1a8] sm:$0xff]
        %v407 = vld [vmem:[#allocation8 + $0x1b0] sm:$0xff]
        %v408 = vld [vmem:[#allocation8 + $0x1b8] sm:$0xff]
        %v409 = vld [vmem:[#allocation8 + $0x1c0] sm:$0xff]
        %v410 = vld [vmem:[#allocation8 + $0x1c8] sm:$0xff]
        %v411 = vld [vmem:[#allocation8 + $0x1d0] sm:$0xff]
        %v412 = vld [vmem:[#allocation8 + $0x1d8] sm:$0xff]
        %v413 = vld [vmem:[#allocation8 + $0x1e0] sm:$0xff]
        %v414 = vld [vmem:[#allocation8 + $0x1e8] sm:$0xff]
        %v415 = vld [vmem:[#allocation8 + $0x1f0] sm:$0xff]
        %v416 = vld [vmem:[#allocation8 + $0x1f8] sm:$0xff]
        %v417 = vld [vmem:[#allocation10] sm:$0xff]
        %v419 = vlaneseq
        %v420 = vshrl.u32 %v419, 7
        %v421 = vsub.s32 0, %v420
        %v422 = vrot.slane %v417, %v421
        %v423 = vlaneseq
        %v424 = vshrl.u32 %v423, 7
        %v425 = vsub.s32 1, %v424
        %v426 = vrot.slane %v417, %v425
        %v427 = vlaneseq
        %v428 = vshrl.u32 %v427, 7
        %v429 = vsub.s32 2, %v428
        %v430 = vrot.slane %v417, %v429
        %v431 = vlaneseq
        %v432 = vshrl.u32 %v431, 7
        %v433 = vsub.s32 3, %v432
        %v434 = vrot.slane %v417, %v433
        %v435 = vlaneseq
        %v436 = vshrl.u32 %v435, 7
        %v437 = vsub.s32 4, %v436
        %v438 = vrot.slane %v417, %v437
        %v439 = vlaneseq
        %v440 = vshrl.u32 %v439, 7
        %v441 = vsub.s32 5, %v440
        %v442 = vrot.slane %v417, %v441
        %v443 = vlaneseq
        %v444 = vshrl.u32 %v443, 7
        %v445 = vsub.s32 6, %v444
        %v446 = vrot.slane %v417, %v445
        %v447 = vlaneseq
        %v448 = vshrl.u32 %v447, 7
        %v449 = vsub.s32 7, %v448
        %v450 = vrot.slane %v417, %v449
        %v475 = vunpack.c.l.b16 %v321
        %v476 = vunpack.c.l.b16 %v322
        %v477 = vunpack.c.l.b16 %v323
        %v478 = vunpack.c.l.b16 %v324
        %v479 = vunpack.c.l.b16 %v325
        %v480 = vunpack.c.l.b16 %v326
        %v481 = vunpack.c.l.b16 %v327
        %v482 = vunpack.c.l.b16 %v328
        %v483 = vunpack.c.l.b16 %v329
        %v484 = vunpack.c.l.b16 %v330
        %v485 = vunpack.c.l.b16 %v331
        %v486 = vunpack.c.l.b16 %v332
        %v487 = vunpack.c.l.b16 %v333
        %v488 = vunpack.c.l.b16 %v334
        %v489 = vunpack.c.l.b16 %v335
        %v490 = vunpack.c.l.b16 %v336
        %v491 = vpack.c.b16 %v476, %v475
        %v492 = vpack.c.b16 %v478, %v477
        %v493 = vpack.c.b16 %v480, %v479
        %v494 = vpack.c.b16 %v482, %v481
        %v495 = vpack.c.b16 %v484, %v483
        %v496 = vpack.c.b16 %v486, %v485
        %v497 = vpack.c.b16 %v488, %v487
        %v498 = vpack.c.b16 %v490, %v489
        %v571 = vunpack.c.l.b16 %v353
        %v572 = vunpack.c.h.b16 %v353
        %v573 = vunpack.c.l.b16 %v354
        %v574 = vunpack.c.h.b16 %v354
        %v575 = vunpack.c.l.b16 %v355
        %v576 = vunpack.c.h.b16 %v355
        %v577 = vunpack.c.l.b16 %v356
        %v578 = vunpack.c.h.b16 %v356
        %v579 = vunpack.c.l.b16 %v357
        %v580 = vunpack.c.h.b16 %v357
        %v581 = vunpack.c.l.b16 %v358
        %v582 = vunpack.c.h.b16 %v358
        %v583 = vunpack.c.l.b16 %v359
        %v584 = vunpack.c.h.b16 %v359
        %v585 = vunpack.c.l.b16 %v360
        %v586 = vunpack.c.h.b16 %v360
        %v587 = vunpack.c.l.b16 %v361
        %v588 = vunpack.c.h.b16 %v361
        %v589 = vunpack.c.l.b16 %v362
        %v590 = vunpack.c.h.b16 %v362
        %v591 = vunpack.c.l.b16 %v363
        %v592 = vunpack.c.h.b16 %v363
        %v593 = vunpack.c.l.b16 %v364
        %v594 = vunpack.c.h.b16 %v364
        %v595 = vunpack.c.l.b16 %v365
        %v596 = vunpack.c.h.b16 %v365
        %v597 = vunpack.c.l.b16 %v366
        %v598 = vunpack.c.h.b16 %v366
        %v599 = vunpack.c.l.b16 %v367
        %v600 = vunpack.c.h.b16 %v367
        %v601 = vunpack.c.l.b16 %v368
        %v602 = vunpack.c.h.b16 %v368
        %v603 = vunpack.c.l.b16 %v369
        %v604 = vunpack.c.h.b16 %v369
        %v605 = vunpack.c.l.b16 %v370
        %v606 = vunpack.c.h.b16 %v370
        %v607 = vunpack.c.l.b16 %v371
        %v608 = vunpack.c.h.b16 %v371
        %v609 = vunpack.c.l.b16 %v372
        %v610 = vunpack.c.h.b16 %v372
        %v611 = vunpack.c.l.b16 %v373
        %v612 = vunpack.c.h.b16 %v373
        %v613 = vunpack.c.l.b16 %v374
        %v614 = vunpack.c.h.b16 %v374
        %v615 = vunpack.c.l.b16 %v375
        %v616 = vunpack.c.h.b16 %v375
        %v617 = vunpack.c.l.b16 %v376
        %v618 = vunpack.c.h.b16 %v376
        %v619 = vunpack.c.l.b16 %v377
        %v620 = vunpack.c.h.b16 %v377
        %v621 = vunpack.c.l.b16 %v378
        %v622 = vunpack.c.h.b16 %v378
        %v623 = vunpack.c.l.b16 %v379
        %v624 = vunpack.c.h.b16 %v379
        %v625 = vunpack.c.l.b16 %v380
        %v626 = vunpack.c.h.b16 %v380
        %v627 = vunpack.c.l.b16 %v381
        %v628 = vunpack.c.h.b16 %v381
        %v629 = vunpack.c.l.b16 %v382
        %v630 = vunpack.c.h.b16 %v382
        %v631 = vunpack.c.l.b16 %v383
        %v632 = vunpack.c.h.b16 %v383
        %v633 = vunpack.c.l.b16 %v384
        %v634 = vunpack.c.h.b16 %v384
        %v635 = vunpack.c.l.b16 %v385
        %v636 = vunpack.c.h.b16 %v385
        %v637 = vunpack.c.l.b16 %v386
        %v638 = vunpack.c.h.b16 %v386
        %v639 = vunpack.c.l.b16 %v387
        %v640 = vunpack.c.h.b16 %v387
        %v641 = vunpack.c.l.b16 %v388
        %v642 = vunpack.c.h.b16 %v388
        %v643 = vunpack.c.l.b16 %v389
        %v644 = vunpack.c.h.b16 %v389
        %v645 = vunpack.c.l.b16 %v390
        %v646 = vunpack.c.h.b16 %v390
        %v647 = vunpack.c.l.b16 %v391
        %v648 = vunpack.c.h.b16 %v391
        %v649 = vunpack.c.l.b16 %v392
        %v650 = vunpack.c.h.b16 %v392
        %v651 = vunpack.c.l.b16 %v393
        %v652 = vunpack.c.h.b16 %v393
        %v653 = vunpack.c.l.b16 %v394
        %v654 = vunpack.c.h.b16 %v394
        %v655 = vunpack.c.l.b16 %v395
        %v656 = vunpack.c.h.b16 %v395
        %v657 = vunpack.c.l.b16 %v396
        %v658 = vunpack.c.h.b16 %v396
        %v659 = vunpack.c.l.b16 %v397
        %v660 = vunpack.c.h.b16 %v397
        %v661 = vunpack.c.l.b16 %v398
        %v662 = vunpack.c.h.b16 %v398
        %v663 = vunpack.c.l.b16 %v399
        %v664 = vunpack.c.h.b16 %v399
        %v665 = vunpack.c.l.b16 %v400
        %v666 = vunpack.c.h.b16 %v400
        %v667 = vunpack.c.l.b16 %v401
        %v668 = vunpack.c.h.b16 %v401
        %v669 = vunpack.c.l.b16 %v402
        %v670 = vunpack.c.h.b16 %v402
        %v671 = vunpack.c.l.b16 %v403
        %v672 = vunpack.c.h.b16 %v403
        %v673 = vunpack.c.l.b16 %v404
        %v674 = vunpack.c.h.b16 %v404
        %v675 = vunpack.c.l.b16 %v405
        %v676 = vunpack.c.h.b16 %v405
        %v677 = vunpack.c.l.b16 %v406
        %v678 = vunpack.c.h.b16 %v406
        %v679 = vunpack.c.l.b16 %v407
        %v680 = vunpack.c.h.b16 %v407
        %v681 = vunpack.c.l.b16 %v408
        %v682 = vunpack.c.h.b16 %v408
        %v683 = vunpack.c.l.b16 %v409
        %v684 = vunpack.c.h.b16 %v409
        %v685 = vunpack.c.l.b16 %v410
        %v686 = vunpack.c.h.b16 %v410
        %v687 = vunpack.c.l.b16 %v411
        %v688 = vunpack.c.h.b16 %v411
        %v689 = vunpack.c.l.b16 %v412
        %v690 = vunpack.c.h.b16 %v412
        %v691 = vunpack.c.l.b16 %v413
        %v692 = vunpack.c.h.b16 %v413
        %v693 = vunpack.c.l.b16 %v414
        %v694 = vunpack.c.h.b16 %v414
        %v695 = vunpack.c.l.b16 %v415
        %v696 = vunpack.c.h.b16 %v415
        %v697 = vunpack.c.l.b16 %v416
        %v698 = vunpack.c.h.b16 %v416
        %v699 = vpack.c.b16 %v579, %v571
        %v700 = vpack.c.b16 %v580, %v572
        %v701 = vpack.c.b16 %v581, %v573
        %v702 = vpack.c.b16 %v582, %v574
        %v703 = vpack.c.b16 %v583, %v575
        %v704 = vpack.c.b16 %v584, %v576
        %v705 = vpack.c.b16 %v585, %v577
        %v706 = vpack.c.b16 %v586, %v578
        %v707 = vpack.c.b16 %v595, %v587
        %v708 = vpack.c.b16 %v596, %v588
        %v709 = vpack.c.b16 %v597, %v589
        %v710 = vpack.c.b16 %v598, %v590
        %v711 = vpack.c.b16 %v599, %v591
        %v712 = vpack.c.b16 %v600, %v592
        %v713 = vpack.c.b16 %v601, %v593
        %v714 = vpack.c.b16 %v602, %v594
        %v715 = vpack.c.b16 %v611, %v603
        %v716 = vpack.c.b16 %v612, %v604
        %v717 = vpack.c.b16 %v613, %v605
        %v718 = vpack.c.b16 %v614, %v606
        %v719 = vpack.c.b16 %v615, %v607
        %v720 = vpack.c.b16 %v616, %v608
        %v721 = vpack.c.b16 %v617, %v609
        %v722 = vpack.c.b16 %v618, %v610
        %v723 = vpack.c.b16 %v627, %v619
        %v724 = vpack.c.b16 %v628, %v620
        %v725 = vpack.c.b16 %v629, %v621
        %v726 = vpack.c.b16 %v630, %v622
        %v727 = vpack.c.b16 %v631, %v623
        %v728 = vpack.c.b16 %v632, %v624
        %v729 = vpack.c.b16 %v633, %v625
        %v730 = vpack.c.b16 %v634, %v626
        %v731 = vpack.c.b16 %v643, %v635
        %v732 = vpack.c.b16 %v644, %v636
        %v733 = vpack.c.b16 %v645, %v637
        %v734 = vpack.c.b16 %v646, %v638
        %v735 = vpack.c.b16 %v647, %v639
        %v736 = vpack.c.b16 %v648, %v640
        %v737 = vpack.c.b16 %v649, %v641
        %v738 = vpack.c.b16 %v650, %v642
        %v739 = vpack.c.b16 %v659, %v651
        %v740 = vpack.c.b16 %v660, %v652
        %v741 = vpack.c.b16 %v661, %v653
        %v742 = vpack.c.b16 %v662, %v654
        %v743 = vpack.c.b16 %v663, %v655
        %v744 = vpack.c.b16 %v664, %v656
        %v745 = vpack.c.b16 %v665, %v657
        %v746 = vpack.c.b16 %v666, %v658
        %v747 = vpack.c.b16 %v675, %v667
        %v748 = vpack.c.b16 %v676, %v668
        %v749 = vpack.c.b16 %v677, %v669
        %v750 = vpack.c.b16 %v678, %v670
        %v751 = vpack.c.b16 %v679, %v671
        %v752 = vpack.c.b16 %v680, %v672
        %v753 = vpack.c.b16 %v681, %v673
        %v754 = vpack.c.b16 %v682, %v674
        %v755 = vpack.c.b16 %v691, %v683
        %v756 = vpack.c.b16 %v692, %v684
        %v757 = vpack.c.b16 %v693, %v685
        %v758 = vpack.c.b16 %v694, %v686
        %v759 = vpack.c.b16 %v695, %v687
        %v760 = vpack.c.b16 %v696, %v688
        %v761 = vpack.c.b16 %v697, %v689
        %v762 = vpack.c.b16 %v698, %v690
        %827 = vmatprep.subr.bf16.mxu0 %v700
        %828 = vmatpush1.bf16.msra.mxu0 %v699
        %829 = vmatprep.subr.bf16.mxu0 %v708
        %830 = vmatpush1.bf16.msra.mxu0 %v707
        %831 = vmatprep.subr.bf16.mxu0 %v716
        %832 = vmatpush1.bf16.msra.mxu0 %v715
        %833 = vmatprep.subr.bf16.mxu0 %v724
        %834 = vmatpush1.bf16.msra.mxu0 %v723
        %835 = vmatprep.subr.bf16.mxu0 %v732
        %836 = vmatpush1.bf16.msra.mxu0 %v731
        %837 = vmatprep.subr.bf16.mxu0 %v740
        %838 = vmatpush1.bf16.msra.mxu0 %v739
        %839 = vmatprep.subr.bf16.mxu0 %v748
        %840 = vmatpush1.bf16.msra.mxu0 %v747
        %841 = vmatprep.subr.bf16.mxu0 %v756
        %842 = vmatpush1.bf16.msra.mxu0 %v755
        %843 = vmatprep.subr.bf16.mxu0 0
        %844 = vmatpush1.bf16.msra.mxu0 0
        %845 = vmatprep.subr.bf16.mxu0 0
        %846 = vmatpush1.bf16.msra.mxu0 0
        %847 = vmatprep.subr.bf16.mxu0 0
        %848 = vmatpush1.bf16.msra.mxu0 0
        %849 = vmatprep.subr.bf16.mxu0 0
        %850 = vmatpush1.bf16.msra.mxu0 0
        %851 = vmatprep.subr.bf16.mxu0 0
        %852 = vmatpush1.bf16.msra.mxu0 0
        %853 = vmatprep.subr.bf16.mxu0 0
        %854 = vmatpush1.bf16.msra.mxu0 0
        %855 = vmatprep.subr.bf16.mxu0 0
        %856 = vmatpush1.bf16.msra.mxu0 0
        %857 = vmatprep.subr.bf16.mxu0 0
        %858 = vmatpush1.bf16.msra.mxu0 0
        %859 = vmatprep.mubr.bf16.mxu0 0
        %860 = vmatmul.mubr.bf16.gmra.mrb[0].mxu0 %v491
        %v861 = vpop.f32.mrb[0].mxu0
        %v862 = vadd.f32 %v422, %v861
        %v863 = vpop.f32.mrb[0].mxu0
        %v864 = vadd.f32 %v426, %v863
        %v865 = vpop.f32.mrb[0].mxu0
        %v866 = vadd.f32 %v422, %v865
        %v867 = vpop.f32.mrb[0].mxu0
        %v868 = vadd.f32 %v426, %v867
        %869 = vmatprep.mubr.bf16.mxu0 0
        %870 = vmatmul.mubr.bf16.gmra.mrb[0].mxu0 %v492
        %v871 = vpop.f32.mrb[0].mxu0
        %v872 = vadd.f32 %v422, %v871
        %v873 = vpop.f32.mrb[0].mxu0
        %v874 = vadd.f32 %v426, %v873
        %v875 = vpop.f32.mrb[0].mxu0
        %v876 = vadd.f32 %v422, %v875
        %v877 = vpop.f32.mrb[0].mxu0
        %v878 = vadd.f32 %v426, %v877
        %879 = vmatprep.mubr.bf16.mxu0 0
        %880 = vmatmul.mubr.bf16.gmra.mrb[0].mxu0 %v493
        %v881 = vpop.f32.mrb[0].mxu0
        %v882 = vadd.f32 %v422, %v881
        %v883 = vpop.f32.mrb[0].mxu0
        %v884 = vadd.f32 %v426, %v883
        %v885 = vpop.f32.mrb[0].mxu0
        %v886 = vadd.f32 %v422, %v885
        %v887 = vpop.f32.mrb[0].mxu0
        %v888 = vadd.f32 %v426, %v887
        %889 = vmatprep.mubr.bf16.mxu0 0
        %890 = vmatmul.mubr.bf16.gmra.mrb[0].mxu0 %v494
        %v891 = vpop.f32.mrb[0].mxu0
        %v892 = vadd.f32 %v422, %v891
        %v893 = vpop.f32.mrb[0].mxu0
        %v894 = vadd.f32 %v426, %v893
        %v895 = vpop.f32.mrb[0].mxu0
        %v896 = vadd.f32 %v422, %v895
        %v897 = vpop.f32.mrb[0].mxu0
        %v898 = vadd.f32 %v426, %v897
        %899 = vmatprep.mubr.bf16.mxu0 0
        %900 = vmatmul.mubr.bf16.gmra.mrb[0].mxu0 %v495
        %v901 = vpop.f32.mrb[0].mxu0
        %v902 = vadd.f32 %v422, %v901
        %v903 = vpop.f32.mrb[0].mxu0
        %v904 = vadd.f32 %v426, %v903
        %v905 = vpop.f32.mrb[0].mxu0
        %v906 = vadd.f32 %v422, %v905
        %v907 = vpop.f32.mrb[0].mxu0
        %v908 = vadd.f32 %v426, %v907
        %909 = vmatprep.mubr.bf16.mxu0 0
        %910 = vmatmul.mubr.bf16.gmra.mrb[0].mxu0 %v496
        %v911 = vpop.f32.mrb[0].mxu0
        %v912 = vadd.f32 %v422, %v911
        %v913 = vpop.f32.mrb[0].mxu0
        %v914 = vadd.f32 %v426, %v913
        %v915 = vpop.f32.mrb[0].mxu0
        %v916 = vadd.f32 %v422, %v915
        %v917 = vpop.f32.mrb[0].mxu0
        %v918 = vadd.f32 %v426, %v917
        %919 = vmatprep.mubr.bf16.mxu0 0
        %920 = vmatmul.mubr.bf16.gmra.mrb[0].mxu0 %v497
        %v921 = vpop.f32.mrb[0].mxu0
        %v922 = vadd.f32 %v422, %v921
        %v923 = vpop.f32.mrb[0].mxu0
        %v924 = vadd.f32 %v426, %v923
        %v925 = vpop.f32.mrb[0].mxu0
        %v926 = vadd.f32 %v422, %v925
        %v927 = vpop.f32.mrb[0].mxu0
        %v928 = vadd.f32 %v426, %v927
        %929 = vmatprep.mubr.bf16.mxu0 0
        %930 = vmatmul.mubr.bf16.gmra.mrb[0].mxu0 %v498
        %v931 = vpop.f32.mrb[0].mxu0
        %v932 = vadd.f32 %v422, %v931
        %v933 = vpop.f32.mrb[0].mxu0
        %v934 = vadd.f32 %v426, %v933
        %v935 = vpop.f32.mrb[0].mxu0
        %v936 = vadd.f32 %v422, %v935
        %v937 = vpop.f32.mrb[0].mxu0
        %v938 = vadd.f32 %v426, %v937
        %939 = vdwg.mxu0
        %940 = vmatprep.subr.bf16.mxu0 %v702
        %941 = vmatpush1.bf16.msra.mxu0 %v701
        %942 = vmatprep.subr.bf16.mxu0 %v710
        %943 = vmatpush1.bf16.msra.mxu0 %v709
        %944 = vmatprep.subr.bf16.mxu0 %v718
        %945 = vmatpush1.bf16.msra.mxu0 %v717
        %946 = vmatprep.subr.bf16.mxu0 %v726
        %947 = vmatpush1.bf16.msra.mxu0 %v725
        %948 = vmatprep.subr.bf16.mxu0 %v734
        %949 = vmatpush1.bf16.msra.mxu0 %v733
        %950 = vmatprep.subr.bf16.mxu0 %v742
        %951 = vmatpush1.bf16.msra.mxu0 %v741
        %952 = vmatprep.subr.bf16.mxu0 %v750
        %953 = vmatpush1.bf16.msra.mxu0 %v749
        %954 = vmatprep.subr.bf16.mxu0 %v758
        %955 = vmatpush1.bf16.msra.mxu0 %v757
        %956 = vmatprep.subr.bf16.mxu0 0
        %957 = vmatpush1.bf16.msra.mxu0 0
        %958 = vmatprep.subr.bf16.mxu0 0
        %959 = vmatpush1.bf16.msra.mxu0 0
        %960 = vmatprep.subr.bf16.mxu0 0
        %961 = vmatpush1.bf16.msra.mxu0 0
        %962 = vmatprep.subr.bf16.mxu0 0
        %963 = vmatpush1.bf16.msra.mxu0 0
        %964 = vmatprep.subr.bf16.mxu0 0
        %965 = vmatpush1.bf16.msra.mxu0 0
        %966 = vmatprep.subr.bf16.mxu0 0
        %967 = vmatpush1.bf16.msra.mxu0 0
        %968 = vmatprep.subr.bf16.mxu0 0
        %969 = vmatpush1.bf16.msra.mxu0 0
        %970 = vmatprep.subr.bf16.mxu0 0
        %971 = vmatpush1.bf16.msra.mxu0 0
        %972 = vmatprep.mubr.bf16.mxu0 0
        %973 = vmatmul.mubr.bf16.gmra.mrb[0].mxu0 %v491
        %v974 = vpop.f32.mrb[0].mxu0
        %v975 = vadd.f32 %v430, %v974
        %v976 = vpop.f32.mrb[0].mxu0
        %v977 = vadd.f32 %v434, %v976
        %v978 = vpop.f32.mrb[0].mxu0
        %v979 = vadd.f32 %v430, %v978
        %v980 = vpop.f32.mrb[0].mxu0
        %v981 = vadd.f32 %v434, %v980
        %982 = vmatprep.mubr.bf16.mxu0 0
        %983 = vmatmul.mubr.bf16.gmra.mrb[0].mxu0 %v492
        %v984 = vpop.f32.mrb[0].mxu0
        %v985 = vadd.f32 %v430, %v984
        %v986 = vpop.f32.mrb[0].mxu0
        %v987 = vadd.f32 %v434, %v986
        %v988 = vpop.f32.mrb[0].mxu0
        %v989 = vadd.f32 %v430, %v988
        %v990 = vpop.f32.mrb[0].mxu0
        %v991 = vadd.f32 %v434, %v990
        %992 = vmatprep.mubr.bf16.mxu0 0
        %993 = vmatmul.mubr.bf16.gmra.mrb[0].mxu0 %v493
        %v994 = vpop.f32.mrb[0].mxu0
        %v995 = vadd.f32 %v430, %v994
        %v996 = vpop.f32.mrb[0].mxu0
        %v997 = vadd.f32 %v434, %v996
        %v998 = vpop.f32.mrb[0].mxu0
        %v999 = vadd.f32 %v430, %v998
        %v1000 = vpop.f32.mrb[0].mxu0
        %v1001 = vadd.f32 %v434, %v1000
        %1002 = vmatprep.mubr.bf16.mxu0 0
        %1003 = vmatmul.mubr.bf16.gmra.mrb[0].mxu0 %v494
        %v1004 = vpop.f32.mrb[0].mxu0
        %v1005 = vadd.f32 %v430, %v1004
        %v1006 = vpop.f32.mrb[0].mxu0
        %v1007 = vadd.f32 %v434, %v1006
        %v1008 = vpop.f32.mrb[0].mxu0
        %v1009 = vadd.f32 %v430, %v1008
        %v1010 = vpop.f32.mrb[0].mxu0
        %v1011 = vadd.f32 %v434, %v1010
        %1012 = vmatprep.mubr.bf16.mxu0 0
        %1013 = vmatmul.mubr.bf16.gmra.mrb[0].mxu0 %v495
        %v1014 = vpop.f32.mrb[0].mxu0
        %v1015 = vadd.f32 %v430, %v1014
        %v1016 = vpop.f32.mrb[0].mxu0
        %v1017 = vadd.f32 %v434, %v1016
        %v1018 = vpop.f32.mrb[0].mxu0
        %v1019 = vadd.f32 %v430, %v1018
        %v1020 = vpop.f32.mrb[0].mxu0
        %v1021 = vadd.f32 %v434, %v1020
        %1022 = vmatprep.mubr.bf16.mxu0 0
        %1023 = vmatmul.mubr.bf16.gmra.mrb[0].mxu0 %v496
        %v1024 = vpop.f32.mrb[0].mxu0
        %v1025 = vadd.f32 %v430, %v1024
        %v1026 = vpop.f32.mrb[0].mxu0
        %v1027 = vadd.f32 %v434, %v1026
        %v1028 = vpop.f32.mrb[0].mxu0
        %v1029 = vadd.f32 %v430, %v1028
        %v1030 = vpop.f32.mrb[0].mxu0
        %v1031 = vadd.f32 %v434, %v1030
        %1032 = vmatprep.mubr.bf16.mxu0 0
        %1033 = vmatmul.mubr.bf16.gmra.mrb[0].mxu0 %v497
        %v1034 = vpop.f32.mrb[0].mxu0
        %v1035 = vadd.f32 %v430, %v1034
        %v1036 = vpop.f32.mrb[0].mxu0
        %v1037 = vadd.f32 %v434, %v1036
        %v1038 = vpop.f32.mrb[0].mxu0
        %v1039 = vadd.f32 %v430, %v1038
        %v1040 = vpop.f32.mrb[0].mxu0
        %v1041 = vadd.f32 %v434, %v1040
        %1042 = vmatprep.mubr.bf16.mxu0 0
        %1043 = vmatmul.mubr.bf16.gmra.mrb[0].mxu0 %v498
        %v1044 = vpop.f32.mrb[0].mxu0
        %v1045 = vadd.f32 %v430, %v1044
        %v1046 = vpop.f32.mrb[0].mxu0
        %v1047 = vadd.f32 %v434, %v1046
        %v1048 = vpop.f32.mrb[0].mxu0
        %v1049 = vadd.f32 %v430, %v1048
        %v1050 = vpop.f32.mrb[0].mxu0
        %v1051 = vadd.f32 %v434, %v1050
        %1052 = vdwg.mxu0
        %1053 = vmatprep.subr.bf16.mxu0 %v704
        %1054 = vmatpush1.bf16.msra.mxu0 %v703
        %1055 = vmatprep.subr.bf16.mxu0 %v712
        %1056 = vmatpush1.bf16.msra.mxu0 %v711
        %1057 = vmatprep.subr.bf16.mxu0 %v720
        %1058 = vmatpush1.bf16.msra.mxu0 %v719
        %1059 = vmatprep.subr.bf16.mxu0 %v728
        %1060 = vmatpush1.bf16.msra.mxu0 %v727
        %1061 = vmatprep.subr.bf16.mxu0 %v736
        %1062 = vmatpush1.bf16.msra.mxu0 %v735
        %1063 = vmatprep.subr.bf16.mxu0 %v744
        %1064 = vmatpush1.bf16.msra.mxu0 %v743
        %1065 = vmatprep.subr.bf16.mxu0 %v752
        %1066 = vmatpush1.bf16.msra.mxu0 %v751
        %1067 = vmatprep.subr.bf16.mxu0 %v760
        %1068 = vmatpush1.bf16.msra.mxu0 %v759
        %1069 = vmatprep.subr.bf16.mxu0 0
        %1070 = vmatpush1.bf16.msra.mxu0 0
        %1071 = vmatprep.subr.bf16.mxu0 0
        %1072 = vmatpush1.bf16.msra.mxu0 0
        %1073 = vmatprep.subr.bf16.mxu0 0
        %1074 = vmatpush1.bf16.msra.mxu0 0
        %1075 = vmatprep.subr.bf16.mxu0 0
        %1076 = vmatpush1.bf16.msra.mxu0 0
        %1077 = vmatprep.subr.bf16.mxu0 0
        %1078 = vmatpush1.bf16.msra.mxu0 0
        %1079 = vmatprep.subr.bf16.mxu0 0
        %1080 = vmatpush1.bf16.msra.mxu0 0
        %1081 = vmatprep.subr.bf16.mxu0 0
        %1082 = vmatpush1.bf16.msra.mxu0 0
        %1083 = vmatprep.subr.bf16.mxu0 0
        %1084 = vmatpush1.bf16.msra.mxu0 0
        %1085 = vmatprep.mubr.bf16.mxu0 0
        %1086 = vmatmul.mubr.bf16.gmra.mrb[0].mxu0 %v491
        %v1087 = vpop.f32.mrb[0].mxu0
        %v1088 = vadd.f32 %v438, %v1087
        %v1089 = vpop.f32.mrb[0].mxu0
        %v1090 = vadd.f32 %v442, %v1089
        %v1091 = vpop.f32.mrb[0].mxu0
        %v1092 = vadd.f32 %v438, %v1091
        %v1093 = vpop.f32.mrb[0].mxu0
        %v1094 = vadd.f32 %v442, %v1093
        %1095 = vmatprep.mubr.bf16.mxu0 0
        %1096 = vmatmul.mubr.bf16.gmra.mrb[0].mxu0 %v492
        %v1097 = vpop.f32.mrb[0].mxu0
        %v1098 = vadd.f32 %v438, %v1097
        %v1099 = vpop.f32.mrb[0].mxu0
        %v1100 = vadd.f32 %v442, %v1099
        %v1101 = vpop.f32.mrb[0].mxu0
        %v1102 = vadd.f32 %v438, %v1101
        %v1103 = vpop.f32.mrb[0].mxu0
        %v1104 = vadd.f32 %v442, %v1103
        %1105 = vmatprep.mubr.bf16.mxu0 0
        %1106 = vmatmul.mubr.bf16.gmra.mrb[0].mxu0 %v493
        %v1107 = vpop.f32.mrb[0].mxu0
        %v1108 = vadd.f32 %v438, %v1107
        %v1109 = vpop.f32.mrb[0].mxu0
        %v1110 = vadd.f32 %v442, %v1109
        %v1111 = vpop.f32.mrb[0].mxu0
        %v1112 = vadd.f32 %v438, %v1111
        %v1113 = vpop.f32.mrb[0].mxu0
        %v1114 = vadd.f32 %v442, %v1113
        %1115 = vmatprep.mubr.bf16.mxu0 0
        %1116 = vmatmul.mubr.bf16.gmra.mrb[0].mxu0 %v494
        %v1117 = vpop.f32.mrb[0].mxu0
        %v1118 = vadd.f32 %v438, %v1117
        %v1119 = vpop.f32.mrb[0].mxu0
        %v1120 = vadd.f32 %v442, %v1119
        %v1121 = vpop.f32.mrb[0].mxu0
        %v1122 = vadd.f32 %v438, %v1121
        %v1123 = vpop.f32.mrb[0].mxu0
        %v1124 = vadd.f32 %v442, %v1123
        %1125 = vmatprep.mubr.bf16.mxu0 0
        %1126 = vmatmul.mubr.bf16.gmra.mrb[0].mxu0 %v495
        %v1127 = vpop.f32.mrb[0].mxu0
        %v1128 = vadd.f32 %v438, %v1127
        %v1129 = vpop.f32.mrb[0].mxu0
        %v1130 = vadd.f32 %v442, %v1129
        %v1131 = vpop.f32.mrb[0].mxu0
        %v1132 = vadd.f32 %v438, %v1131
        %v1133 = vpop.f32.mrb[0].mxu0
        %v1134 = vadd.f32 %v442, %v1133
        %1135 = vmatprep.mubr.bf16.mxu0 0
        %1136 = vmatmul.mubr.bf16.gmra.mrb[0].mxu0 %v496
        %v1137 = vpop.f32.mrb[0].mxu0
        %v1138 = vadd.f32 %v438, %v1137
        %v1139 = vpop.f32.mrb[0].mxu0
        %v1140 = vadd.f32 %v442, %v1139
        %v1141 = vpop.f32.mrb[0].mxu0
        %v1142 = vadd.f32 %v438, %v1141
        %v1143 = vpop.f32.mrb[0].mxu0
        %v1144 = vadd.f32 %v442, %v1143
        %1145 = vmatprep.mubr.bf16.mxu0 0
        %1146 = vmatmul.mubr.bf16.gmra.mrb[0].mxu0 %v497
        %v1147 = vpop.f32.mrb[0].mxu0
        %v1148 = vadd.f32 %v438, %v1147
        %v1149 = vpop.f32.mrb[0].mxu0
        %v1150 = vadd.f32 %v442, %v1149
        %v1151 = vpop.f32.mrb[0].mxu0
        %v1152 = vadd.f32 %v438, %v1151
        %v1153 = vpop.f32.mrb[0].mxu0
        %v1154 = vadd.f32 %v442, %v1153
        %1155 = vmatprep.mubr.bf16.mxu0 0
        %1156 = vmatmul.mubr.bf16.gmra.mrb[0].mxu0 %v498
        %v1157 = vpop.f32.mrb[0].mxu0
        %v1158 = vadd.f32 %v438, %v1157
        %v1159 = vpop.f32.mrb[0].mxu0
        %v1160 = vadd.f32 %v442, %v1159
        %v1161 = vpop.f32.mrb[0].mxu0
        %v1162 = vadd.f32 %v438, %v1161
        %v1163 = vpop.f32.mrb[0].mxu0
        %v1164 = vadd.f32 %v442, %v1163
        %1165 = vdwg.mxu0
        %1166 = vmatprep.subr.bf16.mxu0 %v706
        %1167 = vmatpush1.bf16.msra.mxu0 %v705
        %1168 = vmatprep.subr.bf16.mxu0 %v714
        %1169 = vmatpush1.bf16.msra.mxu0 %v713
        %1170 = vmatprep.subr.bf16.mxu0 %v722
        %1171 = vmatpush1.bf16.msra.mxu0 %v721
        %1172 = vmatprep.subr.bf16.mxu0 %v730
        %1173 = vmatpush1.bf16.msra.mxu0 %v729
        %1174 = vmatprep.subr.bf16.mxu0 %v738
        %1175 = vmatpush1.bf16.msra.mxu0 %v737
        %1176 = vmatprep.subr.bf16.mxu0 %v746
        %1177 = vmatpush1.bf16.msra.mxu0 %v745
        %1178 = vmatprep.subr.bf16.mxu0 %v754
        %1179 = vmatpush1.bf16.msra.mxu0 %v753
        %1180 = vmatprep.subr.bf16.mxu0 %v762
        %1181 = vmatpush1.bf16.msra.mxu0 %v761
        %1182 = vmatprep.subr.bf16.mxu0 0
        %1183 = vmatpush1.bf16.msra.mxu0 0
        %1184 = vmatprep.subr.bf16.mxu0 0
        %1185 = vmatpush1.bf16.msra.mxu0 0
        %1186 = vmatprep.subr.bf16.mxu0 0
        %1187 = vmatpush1.bf16.msra.mxu0 0
        %1188 = vmatprep.subr.bf16.mxu0 0
        %1189 = vmatpush1.bf16.msra.mxu0 0
        %1190 = vmatprep.subr.bf16.mxu0 0
        %1191 = vmatpush1.bf16.msra.mxu0 0
        %1192 = vmatprep.subr.bf16.mxu0 0
        %1193 = vmatpush1.bf16.msra.mxu0 0
        %1194 = vmatprep.subr.bf16.mxu0 0
        %1195 = vmatpush1.bf16.msra.mxu0 0
        %1196 = vmatprep.subr.bf16.mxu0 0
        %1197 = vmatpush1.bf16.msra.mxu0 0
        %1198 = vmatprep.mubr.bf16.mxu0 0
        %1199 = vmatmul.mubr.bf16.gmra.mrb[0].mxu0 %v491
        %v1200 = vpop.f32.mrb[0].mxu0
        %v1201 = vadd.f32 %v446, %v1200
        %v1202 = vpop.f32.mrb[0].mxu0
        %v1203 = vadd.f32 %v450, %v1202
        %v1204 = vpop.f32.mrb[0].mxu0
        %v1205 = vadd.f32 %v446, %v1204
        %v1206 = vpop.f32.mrb[0].mxu0
        %v1207 = vadd.f32 %v450, %v1206
        %1208 = vmatprep.mubr.bf16.mxu0 0
        %1209 = vmatmul.mubr.bf16.gmra.mrb[0].mxu0 %v492
        %v1210 = vpop.f32.mrb[0].mxu0
        %v1211 = vadd.f32 %v446, %v1210
        %v1212 = vpop.f32.mrb[0].mxu0
        %v1213 = vadd.f32 %v450, %v1212
        %v1214 = vpop.f32.mrb[0].mxu0
        %v1215 = vadd.f32 %v446, %v1214
        %v1216 = vpop.f32.mrb[0].mxu0
        %v1217 = vadd.f32 %v450, %v1216
        %1218 = vmatprep.mubr.bf16.mxu0 0
        %1219 = vmatmul.mubr.bf16.gmra.mrb[0].mxu0 %v493
        %v1220 = vpop.f32.mrb[0].mxu0
        %v1221 = vadd.f32 %v446, %v1220
        %v1222 = vpop.f32.mrb[0].mxu0
        %v1223 = vadd.f32 %v450, %v1222
        %v1224 = vpop.f32.mrb[0].mxu0
        %v1225 = vadd.f32 %v446, %v1224
        %v1226 = vpop.f32.mrb[0].mxu0
        %v1227 = vadd.f32 %v450, %v1226
        %1228 = vmatprep.mubr.bf16.mxu0 0
        %1229 = vmatmul.mubr.bf16.gmra.mrb[0].mxu0 %v494
        %v1230 = vpop.f32.mrb[0].mxu0
        %v1231 = vadd.f32 %v446, %v1230
        %v1232 = vpop.f32.mrb[0].mxu0
        %v1233 = vadd.f32 %v450, %v1232
        %v1234 = vpop.f32.mrb[0].mxu0
        %v1235 = vadd.f32 %v446, %v1234
        %v1236 = vpop.f32.mrb[0].mxu0
        %v1237 = vadd.f32 %v450, %v1236
        %1238 = vmatprep.mubr.bf16.mxu0 0
        %1239 = vmatmul.mubr.bf16.gmra.mrb[0].mxu0 %v495
        %v1240 = vpop.f32.mrb[0].mxu0
        %v1241 = vadd.f32 %v446, %v1240
        %v1242 = vpop.f32.mrb[0].mxu0
        %v1243 = vadd.f32 %v450, %v1242
        %v1244 = vpop.f32.mrb[0].mxu0
        %v1245 = vadd.f32 %v446, %v1244
        %v1246 = vpop.f32.mrb[0].mxu0
        %v1247 = vadd.f32 %v450, %v1246
        %1248 = vmatprep.mubr.bf16.mxu0 0
        %1249 = vmatmul.mubr.bf16.gmra.mrb[0].mxu0 %v496
        %v1250 = vpop.f32.mrb[0].mxu0
        %v1251 = vadd.f32 %v446, %v1250
        %v1252 = vpop.f32.mrb[0].mxu0
        %v1253 = vadd.f32 %v450, %v1252
        %v1254 = vpop.f32.mrb[0].mxu0
        %v1255 = vadd.f32 %v446, %v1254
        %v1256 = vpop.f32.mrb[0].mxu0
        %v1257 = vadd.f32 %v450, %v1256
        %1258 = vmatprep.mubr.bf16.mxu0 0
        %1259 = vmatmul.mubr.bf16.gmra.mrb[0].mxu0 %v497
        %v1260 = vpop.f32.mrb[0].mxu0
        %v1261 = vadd.f32 %v446, %v1260
        %v1262 = vpop.f32.mrb[0].mxu0
        %v1263 = vadd.f32 %v450, %v1262
        %v1264 = vpop.f32.mrb[0].mxu0
        %v1265 = vadd.f32 %v446, %v1264
        %v1266 = vpop.f32.mrb[0].mxu0
        %v1267 = vadd.f32 %v450, %v1266
        %1268 = vmatprep.mubr.bf16.mxu0 0
        %1269 = vmatmul.mubr.bf16.gmra.mrb[0].mxu0 %v498
        %v1270 = vpop.f32.mrb[0].mxu0
        %v1271 = vadd.f32 %v446, %v1270
        %v1272 = vpop.f32.mrb[0].mxu0
        %v1273 = vadd.f32 %v450, %v1272
        %v1274 = vpop.f32.mrb[0].mxu0
        %v1275 = vadd.f32 %v446, %v1274
        %v1276 = vpop.f32.mrb[0].mxu0
        %v1277 = vadd.f32 %v450, %v1276
        %1278 = vdwg.mxu0
        %v1279 = vpack.c.bf16 %v866, %v862
        %v1280 = vpack.c.bf16 %v868, %v864
        %v1281 = vpack.c.bf16 %v979, %v975
        %v1282 = vpack.c.bf16 %v981, %v977
        %v1283 = vpack.c.bf16 %v1092, %v1088
        %v1284 = vpack.c.bf16 %v1094, %v1090
        %v1285 = vpack.c.bf16 %v1205, %v1201
        %v1286 = vpack.c.bf16 %v1207, %v1203
        %v1287 = vpack.c.bf16 %v876, %v872
        %v1288 = vpack.c.bf16 %v878, %v874
        %v1289 = vpack.c.bf16 %v989, %v985
        %v1290 = vpack.c.bf16 %v991, %v987
        %v1291 = vpack.c.bf16 %v1102, %v1098
        %v1292 = vpack.c.bf16 %v1104, %v1100
        %v1293 = vpack.c.bf16 %v1215, %v1211
        %v1294 = vpack.c.bf16 %v1217, %v1213
        %v1295 = vpack.c.bf16 %v886, %v882
        %v1296 = vpack.c.bf16 %v888, %v884
        %v1297 = vpack.c.bf16 %v999, %v995
        %v1298 = vpack.c.bf16 %v1001, %v997
        %v1299 = vpack.c.bf16 %v1112, %v1108
        %v1300 = vpack.c.bf16 %v1114, %v1110
        %v1301 = vpack.c.bf16 %v1225, %v1221
        %v1302 = vpack.c.bf16 %v1227, %v1223
        %v1303 = vpack.c.bf16 %v896, %v892
        %v1304 = vpack.c.bf16 %v898, %v894
        %v1305 = vpack.c.bf16 %v1009, %v1005
        %v1306 = vpack.c.bf16 %v1011, %v1007
        %v1307 = vpack.c.bf16 %v1122, %v1118
        %v1308 = vpack.c.bf16 %v1124, %v1120
        %v1309 = vpack.c.bf16 %v1235, %v1231
        %v1310 = vpack.c.bf16 %v1237, %v1233
        %v1311 = vpack.c.bf16 %v906, %v902
        %v1312 = vpack.c.bf16 %v908, %v904
        %v1313 = vpack.c.bf16 %v1019, %v1015
        %v1314 = vpack.c.bf16 %v1021, %v1017
        %v1315 = vpack.c.bf16 %v1132, %v1128
        %v1316 = vpack.c.bf16 %v1134, %v1130
        %v1317 = vpack.c.bf16 %v1245, %v1241
        %v1318 = vpack.c.bf16 %v1247, %v1243
        %v1319 = vpack.c.bf16 %v916, %v912
        %v1320 = vpack.c.bf16 %v918, %v914
        %v1321 = vpack.c.bf16 %v1029, %v1025
        %v1322 = vpack.c.bf16 %v1031, %v1027
        %v1323 = vpack.c.bf16 %v1142, %v1138
        %v1324 = vpack.c.bf16 %v1144, %v1140
        %v1325 = vpack.c.bf16 %v1255, %v1251
        %v1326 = vpack.c.bf16 %v1257, %v1253
        %v1327 = vpack.c.bf16 %v926, %v922
        %v1328 = vpack.c.bf16 %v928, %v924
        %v1329 = vpack.c.bf16 %v1039, %v1035
        %v1330 = vpack.c.bf16 %v1041, %v1037
        %v1331 = vpack.c.bf16 %v1152, %v1148
        %v1332 = vpack.c.bf16 %v1154, %v1150
        %v1333 = vpack.c.bf16 %v1265, %v1261
        %v1334 = vpack.c.bf16 %v1267, %v1263
        %v1335 = vpack.c.bf16 %v936, %v932
        %v1336 = vpack.c.bf16 %v938, %v934
        %v1337 = vpack.c.bf16 %v1049, %v1045
        %v1338 = vpack.c.bf16 %v1051, %v1047
        %v1339 = vpack.c.bf16 %v1162, %v1158
        %v1340 = vpack.c.bf16 %v1164, %v1160
        %v1341 = vpack.c.bf16 %v1275, %v1271
        %v1342 = vpack.c.bf16 %v1277, %v1273
        %v1343 = vtanh.bf16.pop %v1279
        %v1344 = vtanh.bf16.pop %v1280
        %v1345 = vtanh.bf16.pop %v1281
        %v1346 = vtanh.bf16.pop %v1282
        %v1347 = vtanh.bf16.pop %v1287
        %v1348 = vtanh.bf16.pop %v1288
        %v1349 = vtanh.bf16.pop %v1289
        %v1350 = vtanh.bf16.pop %v1290
        %v1351 = vtanh.bf16.pop %v1295
        %v1352 = vtanh.bf16.pop %v1296
        %v1353 = vtanh.bf16.pop %v1297
        %v1354 = vtanh.bf16.pop %v1298
        %v1355 = vtanh.bf16.pop %v1303
        %v1356 = vtanh.bf16.pop %v1304
        %v1357 = vtanh.bf16.pop %v1305
        %v1358 = vtanh.bf16.pop %v1306
        %v1359 = vtanh.bf16.pop %v1311
        %v1360 = vtanh.bf16.pop %v1312
        %v1361 = vtanh.bf16.pop %v1313
        %v1362 = vtanh.bf16.pop %v1314
        %v1363 = vtanh.bf16.pop %v1319
        %v1364 = vtanh.bf16.pop %v1320
        %v1365 = vtanh.bf16.pop %v1321
        %v1366 = vtanh.bf16.pop %v1322
        %v1367 = vtanh.bf16.pop %v1327
        %v1368 = vtanh.bf16.pop %v1328
        %v1369 = vtanh.bf16.pop %v1329
        %v1370 = vtanh.bf16.pop %v1330
        %v1371 = vtanh.bf16.pop %v1335
        %v1372 = vtanh.bf16.pop %v1336
        %v1373 = vtanh.bf16.pop %v1337
        %v1374 = vtanh.bf16.pop %v1338
        %v1375 = vxor.u32 %v1283, 2147516416
        %v1376 = vxor.u32 %v1284, 2147516416
        %v1377 = vxor.u32 %v1285, 2147516416
        %v1378 = vxor.u32 %v1286, 2147516416
        %v1379 = vxor.u32 %v1291, 2147516416
        %v1380 = vxor.u32 %v1292, 2147516416
        %v1381 = vxor.u32 %v1293, 2147516416
        %v1382 = vxor.u32 %v1294, 2147516416
        %v1383 = vxor.u32 %v1299, 2147516416
        %v1384 = vxor.u32 %v1300, 2147516416
        %v1385 = vxor.u32 %v1301, 2147516416
        %v1386 = vxor.u32 %v1302, 2147516416
        %v1387 = vxor.u32 %v1307, 2147516416
        %v1388 = vxor.u32 %v1308, 2147516416
        %v1389 = vxor.u32 %v1309, 2147516416
        %v1390 = vxor.u32 %v1310, 2147516416
        %v1391 = vxor.u32 %v1315, 2147516416
        %v1392 = vxor.u32 %v1316, 2147516416
        %v1393 = vxor.u32 %v1317, 2147516416
        %v1394 = vxor.u32 %v1318, 2147516416
        %v1395 = vxor.u32 %v1323, 2147516416
        %v1396 = vxor.u32 %v1324, 2147516416
        %v1397 = vxor.u32 %v1325, 2147516416
        %v1398 = vxor.u32 %v1326, 2147516416
        %v1399 = vxor.u32 %v1331, 2147516416
        %v1400 = vxor.u32 %v1332, 2147516416
        %v1401 = vxor.u32 %v1333, 2147516416
        %v1402 = vxor.u32 %v1334, 2147516416
        %v1403 = vxor.u32 %v1339, 2147516416
        %v1404 = vxor.u32 %v1340, 2147516416
        %v1405 = vxor.u32 %v1341, 2147516416
        %v1406 = vxor.u32 %v1342, 2147516416
        %v1408 = vmul.bf16 %v1375, 1069105081
        %v1409 = vpow.bf16.pop %v1408
        %v1411 = vmul.bf16 %v1376, 1069105081
        %v1412 = vpow.bf16.pop %v1411
        %v1414 = vmul.bf16 %v1377, 1069105081
        %v1415 = vpow.bf16.pop %v1414
        %v1417 = vmul.bf16 %v1378, 1069105081
        %v1418 = vpow.bf16.pop %v1417
        %v1420 = vmul.bf16 %v1379, 1069105081
        %v1421 = vpow.bf16.pop %v1420
        %v1423 = vmul.bf16 %v1380, 1069105081
        %v1424 = vpow.bf16.pop %v1423
        %v1426 = vmul.bf16 %v1381, 1069105081
        %v1427 = vpow.bf16.pop %v1426
        %v1429 = vmul.bf16 %v1382, 1069105081
        %v1430 = vpow.bf16.pop %v1429
        %v1432 = vmul.bf16 %v1383, 1069105081
        %v1433 = vpow.bf16.pop %v1432
        %v1435 = vmul.bf16 %v1384, 1069105081
        %v1436 = vpow.bf16.pop %v1435
        %v1438 = vmul.bf16 %v1385, 1069105081
        %v1439 = vpow.bf16.pop %v1438
        %v1441 = vmul.bf16 %v1386, 1069105081
        %v1442 = vpow.bf16.pop %v1441
        %v1444 = vmul.bf16 %v1387, 1069105081
        %v1445 = vpow.bf16.pop %v1444
        %v1447 = vmul.bf16 %v1388, 1069105081
        %v1448 = vpow.bf16.pop %v1447
        %v1450 = vmul.bf16 %v1389, 1069105081
        %v1451 = vpow.bf16.pop %v1450
        %v1453 = vmul.bf16 %v1390, 1069105081
        %v1454 = vpow.bf16.pop %v1453
        %v1456 = vmul.bf16 %v1391, 1069105081
        %v1457 = vpow.bf16.pop %v1456
        %v1459 = vmul.bf16 %v1392, 1069105081
        %v1460 = vpow.bf16.pop %v1459
        %v1462 = vmul.bf16 %v1393, 1069105081
        %v1463 = vpow.bf16.pop %v1462
        %v1465 = vmul.bf16 %v1394, 1069105081
        %v1466 = vpow.bf16.pop %v1465
        %v1468 = vmul.bf16 %v1395, 1069105081
        %v1469 = vpow.bf16.pop %v1468
        %v1471 = vmul.bf16 %v1396, 1069105081
        %v1472 = vpow.bf16.pop %v1471
        %v1474 = vmul.bf16 %v1397, 1069105081
        %v1475 = vpow.bf16.pop %v1474
        %v1477 = vmul.bf16 %v1398, 1069105081
        %v1478 = vpow.bf16.pop %v1477
        %v1480 = vmul.bf16 %v1399, 1069105081
        %v1481 = vpow.bf16.pop %v1480
        %v1483 = vmul.bf16 %v1400, 1069105081
        %v1484 = vpow.bf16.pop %v1483
        %v1486 = vmul.bf16 %v1401, 1069105081
        %v1487 = vpow.bf16.pop %v1486
        %v1489 = vmul.bf16 %v1402, 1069105081
        %v1490 = vpow.bf16.pop %v1489
        %v1492 = vmul.bf16 %v1403, 1069105081
        %v1493 = vpow.bf16.pop %v1492
        %v1495 = vmul.bf16 %v1404, 1069105081
        %v1496 = vpow.bf16.pop %v1495
        %v1498 = vmul.bf16 %v1405, 1069105081
        %v1499 = vpow.bf16.pop %v1498
        %v1501 = vmul.bf16 %v1406, 1069105081
        %v1502 = vpow.bf16.pop %v1501
        %v1503 = vadd.bf16 %v1409, 1065369472
        %v1504 = vadd.bf16 %v1412, 1065369472
        %v1505 = vadd.bf16 %v1415, 1065369472
        %v1506 = vadd.bf16 %v1418, 1065369472
        %v1507 = vadd.bf16 %v1421, 1065369472
        %v1508 = vadd.bf16 %v1424, 1065369472
        %v1509 = vadd.bf16 %v1427, 1065369472
        %v1510 = vadd.bf16 %v1430, 1065369472
        %v1511 = vadd.bf16 %v1433, 1065369472
        %v1512 = vadd.bf16 %v1436, 1065369472
        %v1513 = vadd.bf16 %v1439, 1065369472
        %v1514 = vadd.bf16 %v1442, 1065369472
        %v1515 = vadd.bf16 %v1445, 1065369472
        %v1516 = vadd.bf16 %v1448, 1065369472
        %v1517 = vadd.bf16 %v1451, 1065369472
        %v1518 = vadd.bf16 %v1454, 1065369472
        %v1519 = vadd.bf16 %v1457, 1065369472
        %v1520 = vadd.bf16 %v1460, 1065369472
        %v1521 = vadd.bf16 %v1463, 1065369472
        %v1522 = vadd.bf16 %v1466, 1065369472
        %v1523 = vadd.bf16 %v1469, 1065369472
        %v1524 = vadd.bf16 %v1472, 1065369472
        %v1525 = vadd.bf16 %v1475, 1065369472
        %v1526 = vadd.bf16 %v1478, 1065369472
        %v1527 = vadd.bf16 %v1481, 1065369472
        %v1528 = vadd.bf16 %v1484, 1065369472
        %v1529 = vadd.bf16 %v1487, 1065369472
        %v1530 = vadd.bf16 %v1490, 1065369472
        %v1531 = vadd.bf16 %v1493, 1065369472
        %v1532 = vadd.bf16 %v1496, 1065369472
        %v1533 = vadd.bf16 %v1499, 1065369472
        %v1534 = vadd.bf16 %v1502, 1065369472
        %v1535 = vrcp.bf16.pop %v1503
        %v1536 = vmul.bf16 1065369472, %v1535
        %v1537 = vrcp.bf16.pop %v1504
        %v1538 = vmul.bf16 1065369472, %v1537
        %v1539 = vrcp.bf16.pop %v1505
        %v1540 = vmul.bf16 1065369472, %v1539
        %v1541 = vrcp.bf16.pop %v1506
        %v1542 = vmul.bf16 1065369472, %v1541
        %v1543 = vrcp.bf16.pop %v1507
        %v1544 = vmul.bf16 1065369472, %v1543
        %v1545 = vrcp.bf16.pop %v1508
        %v1546 = vmul.bf16 1065369472, %v1545
        %v1547 = vrcp.bf16.pop %v1509
        %v1548 = vmul.bf16 1065369472, %v1547
        %v1549 = vrcp.bf16.pop %v1510
        %v1550 = vmul.bf16 1065369472, %v1549
        %v1551 = vrcp.bf16.pop %v1511
        %v1552 = vmul.bf16 1065369472, %v1551
        %v1553 = vrcp.bf16.pop %v1512
        %v1554 = vmul.bf16 1065369472, %v1553
        %v1555 = vrcp.bf16.pop %v1513
        %v1556 = vmul.bf16 1065369472, %v1555
        %v1557 = vrcp.bf16.pop %v1514
        %v1558 = vmul.bf16 1065369472, %v1557
        %v1559 = vrcp.bf16.pop %v1515
        %v1560 = vmul.bf16 1065369472, %v1559
        %v1561 = vrcp.bf16.pop %v1516
        %v1562 = vmul.bf16 1065369472, %v1561
        %v1563 = vrcp.bf16.pop %v1517
        %v1564 = vmul.bf16 1065369472, %v1563
        %v1565 = vrcp.bf16.pop %v1518
        %v1566 = vmul.bf16 1065369472, %v1565
        %v1567 = vrcp.bf16.pop %v1519
        %v1568 = vmul.bf16 1065369472, %v1567
        %v1569 = vrcp.bf16.pop %v1520
        %v1570 = vmul.bf16 1065369472, %v1569
        %v1571 = vrcp.bf16.pop %v1521
        %v1572 = vmul.bf16 1065369472, %v1571
        %v1573 = vrcp.bf16.pop %v1522
        %v1574 = vmul.bf16 1065369472, %v1573
        %v1575 = vrcp.bf16.pop %v1523
        %v1576 = vmul.bf16 1065369472, %v1575
        %v1577 = vrcp.bf16.pop %v1524
        %v1578 = vmul.bf16 1065369472, %v1577
        %v1579 = vrcp.bf16.pop %v1525
        %v1580 = vmul.bf16 1065369472, %v1579
        %v1581 = vrcp.bf16.pop %v1526
        %v1582 = vmul.bf16 1065369472, %v1581
        %v1583 = vrcp.bf16.pop %v1527
        %v1584 = vmul.bf16 1065369472, %v1583
        %v1585 = vrcp.bf16.pop %v1528
        %v1586 = vmul.bf16 1065369472, %v1585
        %v1587 = vrcp.bf16.pop %v1529
        %v1588 = vmul.bf16 1065369472, %v1587
        %v1589 = vrcp.bf16.pop %v1530
        %v1590 = vmul.bf16 1065369472, %v1589
        %v1591 = vrcp.bf16.pop %v1531
        %v1592 = vmul.bf16 1065369472, %v1591
        %v1593 = vrcp.bf16.pop %v1532
        %v1594 = vmul.bf16 1065369472, %v1593
        %v1595 = vrcp.bf16.pop %v1533
        %v1596 = vmul.bf16 1065369472, %v1595
        %v1597 = vrcp.bf16.pop %v1534
        %v1598 = vmul.bf16 1065369472, %v1597
        %v1599 = vmul.bf16 %v1343, %v1536
        %v1600 = vmul.bf16 %v1344, %v1538
        %v1601 = vmul.bf16 %v1345, %v1540
        %v1602 = vmul.bf16 %v1346, %v1542
        %v1603 = vmul.bf16 %v1347, %v1544
        %v1604 = vmul.bf16 %v1348, %v1546
        %v1605 = vmul.bf16 %v1349, %v1548
        %v1606 = vmul.bf16 %v1350, %v1550
        %v1607 = vmul.bf16 %v1351, %v1552
        %v1608 = vmul.bf16 %v1352, %v1554
        %v1609 = vmul.bf16 %v1353, %v1556
        %v1610 = vmul.bf16 %v1354, %v1558
        %v1611 = vmul.bf16 %v1355, %v1560
        %v1612 = vmul.bf16 %v1356, %v1562
        %v1613 = vmul.bf16 %v1357, %v1564
        %v1614 = vmul.bf16 %v1358, %v1566
        %v1615 = vmul.bf16 %v1359, %v1568
        %v1616 = vmul.bf16 %v1360, %v1570
        %v1617 = vmul.bf16 %v1361, %v1572
        %v1618 = vmul.bf16 %v1362, %v1574
        %v1619 = vmul.bf16 %v1363, %v1576
        %v1620 = vmul.bf16 %v1364, %v1578
        %v1621 = vmul.bf16 %v1365, %v1580
        %v1622 = vmul.bf16 %v1366, %v1582
        %v1623 = vmul.bf16 %v1367, %v1584
        %v1624 = vmul.bf16 %v1368, %v1586
        %v1625 = vmul.bf16 %v1369, %v1588
        %v1626 = vmul.bf16 %v1370, %v1590
        %v1627 = vmul.bf16 %v1371, %v1592
        %v1628 = vmul.bf16 %v1372, %v1594
        %v1629 = vmul.bf16 %v1373, %v1596
        %v1630 = vmul.bf16 %v1374, %v1598
        %v1631 = vld [vmem:[#allocation11] sm:$0xf]
        %v1632 = vld [vmem:[#allocation11 + $0x4] sm:$0xf]
        %v1633 = vld [vmem:[#allocation11 + $0x8] sm:$0xf]
        %v1634 = vld [vmem:[#allocation11 + $0xc] sm:$0xf]
        %v1635 = vld [vmem:[#allocation11 + $0x10] sm:$0xf]
        %v1636 = vld [vmem:[#allocation11 + $0x14] sm:$0xf]
        %v1637 = vld [vmem:[#allocation11 + $0x18] sm:$0xf]
        %v1638 = vld [vmem:[#allocation11 + $0x1c] sm:$0xf]
        %v1639 = vld [vmem:[#allocation11 + $0x20] sm:$0xf]
        %v1640 = vld [vmem:[#allocation11 + $0x24] sm:$0xf]
        %v1641 = vld [vmem:[#allocation11 + $0x28] sm:$0xf]
        %v1642 = vld [vmem:[#allocation11 + $0x2c] sm:$0xf]
        %v1643 = vld [vmem:[#allocation11 + $0x30] sm:$0xf]
        %v1644 = vld [vmem:[#allocation11 + $0x34] sm:$0xf]
        %v1645 = vld [vmem:[#allocation11 + $0x38] sm:$0xf]
        %v1646 = vld [vmem:[#allocation11 + $0x3c] sm:$0xf]
        %v1647 = vld [vmem:[#allocation11 + $0x40] sm:$0xf]
        %v1648 = vld [vmem:[#allocation11 + $0x44] sm:$0xf]
        %v1649 = vld [vmem:[#allocation11 + $0x48] sm:$0xf]
        %v1650 = vld [vmem:[#allocation11 + $0x4c] sm:$0xf]
        %v1651 = vld [vmem:[#allocation11 + $0x50] sm:$0xf]
        %v1652 = vld [vmem:[#allocation11 + $0x54] sm:$0xf]
        %v1653 = vld [vmem:[#allocation11 + $0x58] sm:$0xf]
        %v1654 = vld [vmem:[#allocation11 + $0x5c] sm:$0xf]
        %v1655 = vld [vmem:[#allocation11 + $0x60] sm:$0xf]
        %v1656 = vld [vmem:[#allocation11 + $0x64] sm:$0xf]
        %v1657 = vld [vmem:[#allocation11 + $0x68] sm:$0xf]
        %v1658 = vld [vmem:[#allocation11 + $0x6c] sm:$0xf]
        %v1659 = vld [vmem:[#allocation11 + $0x70] sm:$0xf]
        %v1660 = vld [vmem:[#allocation11 + $0x74] sm:$0xf]
        %v1661 = vld [vmem:[#allocation11 + $0x78] sm:$0xf]
        %v1662 = vld [vmem:[#allocation11 + $0x7c] sm:$0xf]
        %v1663 = vld [vmem:[#allocation11 + $0x80] sm:$0xf]
        %v1664 = vld [vmem:[#allocation11 + $0x84] sm:$0xf]
        %v1665 = vld [vmem:[#allocation11 + $0x88] sm:$0xf]
        %v1666 = vld [vmem:[#allocation11 + $0x8c] sm:$0xf]
        %v1667 = vld [vmem:[#allocation11 + $0x90] sm:$0xf]
        %v1668 = vld [vmem:[#allocation11 + $0x94] sm:$0xf]
        %v1669 = vld [vmem:[#allocation11 + $0x98] sm:$0xf]
        %v1670 = vld [vmem:[#allocation11 + $0x9c] sm:$0xf]
        %v1671 = vld [vmem:[#allocation11 + $0xa0] sm:$0xf]
        %v1672 = vld [vmem:[#allocation11 + $0xa4] sm:$0xf]
        %v1673 = vld [vmem:[#allocation11 + $0xa8] sm:$0xf]
        %v1674 = vld [vmem:[#allocation11 + $0xac] sm:$0xf]
        %v1675 = vld [vmem:[#allocation11 + $0xb0] sm:$0xf]
        %v1676 = vld [vmem:[#allocation11 + $0xb4] sm:$0xf]
        %v1677 = vld [vmem:[#allocation11 + $0xb8] sm:$0xf]
        %v1678 = vld [vmem:[#allocation11 + $0xbc] sm:$0xf]
        %v1679 = vld [vmem:[#allocation11 + $0xc0] sm:$0xf]
        %v1680 = vld [vmem:[#allocation11 + $0xc4] sm:$0xf]
        %v1681 = vld [vmem:[#allocation11 + $0xc8] sm:$0xf]
        %v1682 = vld [vmem:[#allocation11 + $0xcc] sm:$0xf]
        %v1683 = vld [vmem:[#allocation11 + $0xd0] sm:$0xf]
        %v1684 = vld [vmem:[#allocation11 + $0xd4] sm:$0xf]
        %v1685 = vld [vmem:[#allocation11 + $0xd8] sm:$0xf]
        %v1686 = vld [vmem:[#allocation11 + $0xdc] sm:$0xf]
        %v1687 = vld [vmem:[#allocation11 + $0xe0] sm:$0xf]
        %v1688 = vld [vmem:[#allocation11 + $0xe4] sm:$0xf]
        %v1689 = vld [vmem:[#allocation11 + $0xe8] sm:$0xf]
        %v1690 = vld [vmem:[#allocation11 + $0xec] sm:$0xf]
        %v1691 = vld [vmem:[#allocation11 + $0xf0] sm:$0xf]
        %v1692 = vld [vmem:[#allocation11 + $0xf4] sm:$0xf]
        %v1693 = vld [vmem:[#allocation11 + $0xf8] sm:$0xf]
        %v1694 = vld [vmem:[#allocation11 + $0xfc] sm:$0xf]
        %v1695 = vld [vmem:[#allocation13] sm:$0x1]
        %v1697 = vlaneseq
        %v1698 = vshrl.u32 %v1697, 7
        %v1699 = vsub.s32 0, %v1698
        %v1700 = vrot.slane %v1695, %v1699
        %v1766 = vunpack.c.l.b16 %v1631
        %v1767 = vunpack.c.l.b16 %v1632
        %v1768 = vunpack.c.l.b16 %v1633
        %v1769 = vunpack.c.l.b16 %v1634
        %v1770 = vunpack.c.l.b16 %v1635
        %v1771 = vunpack.c.l.b16 %v1636
        %v1772 = vunpack.c.l.b16 %v1637
        %v1773 = vunpack.c.l.b16 %v1638
        %v1774 = vunpack.c.l.b16 %v1639
        %v1775 = vunpack.c.l.b16 %v1640
        %v1776 = vunpack.c.l.b16 %v1641
        %v1777 = vunpack.c.l.b16 %v1642
        %v1778 = vunpack.c.l.b16 %v1643
        %v1779 = vunpack.c.l.b16 %v1644
        %v1780 = vunpack.c.l.b16 %v1645
        %v1781 = vunpack.c.l.b16 %v1646
        %v1782 = vunpack.c.l.b16 %v1647
        %v1783 = vunpack.c.l.b16 %v1648
        %v1784 = vunpack.c.l.b16 %v1649
        %v1785 = vunpack.c.l.b16 %v1650
        %v1786 = vunpack.c.l.b16 %v1651
        %v1787 = vunpack.c.l.b16 %v1652
        %v1788 = vunpack.c.l.b16 %v1653
        %v1789 = vunpack.c.l.b16 %v1654
        %v1790 = vunpack.c.l.b16 %v1655
        %v1791 = vunpack.c.l.b16 %v1656
        %v1792 = vunpack.c.l.b16 %v1657
        %v1793 = vunpack.c.l.b16 %v1658
        %v1794 = vunpack.c.l.b16 %v1659
        %v1795 = vunpack.c.l.b16 %v1660
        %v1796 = vunpack.c.l.b16 %v1661
        %v1797 = vunpack.c.l.b16 %v1662
        %v1798 = vunpack.c.l.b16 %v1663
        %v1799 = vunpack.c.l.b16 %v1664
        %v1800 = vunpack.c.l.b16 %v1665
        %v1801 = vunpack.c.l.b16 %v1666
        %v1802 = vunpack.c.l.b16 %v1667
        %v1803 = vunpack.c.l.b16 %v1668
        %v1804 = vunpack.c.l.b16 %v1669
        %v1805 = vunpack.c.l.b16 %v1670
        %v1806 = vunpack.c.l.b16 %v1671
        %v1807 = vunpack.c.l.b16 %v1672
        %v1808 = vunpack.c.l.b16 %v1673
        %v1809 = vunpack.c.l.b16 %v1674
        %v1810 = vunpack.c.l.b16 %v1675
        %v1811 = vunpack.c.l.b16 %v1676
        %v1812 = vunpack.c.l.b16 %v1677
        %v1813 = vunpack.c.l.b16 %v1678
        %v1814 = vunpack.c.l.b16 %v1679
        %v1815 = vunpack.c.l.b16 %v1680
        %v1816 = vunpack.c.l.b16 %v1681
        %v1817 = vunpack.c.l.b16 %v1682
        %v1818 = vunpack.c.l.b16 %v1683
        %v1819 = vunpack.c.l.b16 %v1684
        %v1820 = vunpack.c.l.b16 %v1685
        %v1821 = vunpack.c.l.b16 %v1686
        %v1822 = vunpack.c.l.b16 %v1687
        %v1823 = vunpack.c.l.b16 %v1688
        %v1824 = vunpack.c.l.b16 %v1689
        %v1825 = vunpack.c.l.b16 %v1690
        %v1826 = vunpack.c.l.b16 %v1691
        %v1827 = vunpack.c.l.b16 %v1692
        %v1828 = vunpack.c.l.b16 %v1693
        %v1829 = vunpack.c.l.b16 %v1694
        %v1830 = vpack.c.b16 %v1767, %v1766
        %v1831 = vpack.c.b16 %v1769, %v1768
        %v1832 = vpack.c.b16 %v1771, %v1770
        %v1833 = vpack.c.b16 %v1773, %v1772
        %v1834 = vpack.c.b16 %v1775, %v1774
        %v1835 = vpack.c.b16 %v1777, %v1776
        %v1836 = vpack.c.b16 %v1779, %v1778
        %v1837 = vpack.c.b16 %v1781, %v1780
        %v1838 = vpack.c.b16 %v1783, %v1782
        %v1839 = vpack.c.b16 %v1785, %v1784
        %v1840 = vpack.c.b16 %v1787, %v1786
        %v1841 = vpack.c.b16 %v1789, %v1788
        %v1842 = vpack.c.b16 %v1791, %v1790
        %v1843 = vpack.c.b16 %v1793, %v1792
        %v1844 = vpack.c.b16 %v1795, %v1794
        %v1845 = vpack.c.b16 %v1797, %v1796
        %v1846 = vpack.c.b16 %v1799, %v1798
        %v1847 = vpack.c.b16 %v1801, %v1800
        %v1848 = vpack.c.b16 %v1803, %v1802
        %v1849 = vpack.c.b16 %v1805, %v1804
        %v1850 = vpack.c.b16 %v1807, %v1806
        %v1851 = vpack.c.b16 %v1809, %v1808
        %v1852 = vpack.c.b16 %v1811, %v1810
        %v1853 = vpack.c.b16 %v1813, %v1812
        %v1854 = vpack.c.b16 %v1815, %v1814
        %v1855 = vpack.c.b16 %v1817, %v1816
        %v1856 = vpack.c.b16 %v1819, %v1818
        %v1857 = vpack.c.b16 %v1821, %v1820
        %v1858 = vpack.c.b16 %v1823, %v1822
        %v1859 = vpack.c.b16 %v1825, %v1824
        %v1860 = vpack.c.b16 %v1827, %v1826
        %v1861 = vpack.c.b16 %v1829, %v1828
        %1894 = vmatprep.subr.bf16.mxu0 0
        %1895 = vmatpush1.bf16.msra.mxu0 %v1830
        %1896 = vmatprep.subr.bf16.mxu0 0
        %1897 = vmatpush1.bf16.msra.mxu0 %v1831
        %1898 = vmatprep.subr.bf16.mxu0 0
        %1899 = vmatpush1.bf16.msra.mxu0 %v1832
        %1900 = vmatprep.subr.bf16.mxu0 0
        %1901 = vmatpush1.bf16.msra.mxu0 %v1833
        %1902 = vmatprep.subr.bf16.mxu0 0
        %1903 = vmatpush1.bf16.msra.mxu0 %v1834
        %1904 = vmatprep.subr.bf16.mxu0 0
        %1905 = vmatpush1.bf16.msra.mxu0 %v1835
        %1906 = vmatprep.subr.bf16.mxu0 0
        %1907 = vmatpush1.bf16.msra.mxu0 %v1836
        %1908 = vmatprep.subr.bf16.mxu0 0
        %1909 = vmatpush1.bf16.msra.mxu0 %v1837
        %1910 = vmatprep.subr.bf16.mxu0 0
        %1911 = vmatpush1.bf16.msra.mxu0 %v1838
        %1912 = vmatprep.subr.bf16.mxu0 0
        %1913 = vmatpush1.bf16.msra.mxu0 %v1839
        %1914 = vmatprep.subr.bf16.mxu0 0
        %1915 = vmatpush1.bf16.msra.mxu0 %v1840
        %1916 = vmatprep.subr.bf16.mxu0 0
        %1917 = vmatpush1.bf16.msra.mxu0 %v1841
        %1918 = vmatprep.subr.bf16.mxu0 0
        %1919 = vmatpush1.bf16.msra.mxu0 %v1842
        %1920 = vmatprep.subr.bf16.mxu0 0
        %1921 = vmatpush1.bf16.msra.mxu0 %v1843
        %1922 = vmatprep.subr.bf16.mxu0 0
        %1923 = vmatpush1.bf16.msra.mxu0 %v1844
        %1924 = vmatprep.subr.bf16.mxu0 0
        %1925 = vmatpush1.bf16.msra.mxu0 %v1845
        %1926 = vmatprep.mubr.bf16.mxu0 %v1600
        %1927 = vmatmul.mubr.bf16.gmra.mrb[0].mxu0 %v1599
        %v1928 = vpop.f32.mrb[0].mxu0
        %v1929 = vadd.f32 %v1700, %v1928
        %v1930 = vpop.f32.mrb[0].mxu0
        %v1931 = vpop.f32.mrb[0].mxu0
        %v1932 = vadd.f32 %v1700, %v1931
        %v1933 = vpop.f32.mrb[0].mxu0
        %1934 = vmatprep.mubr.bf16.mxu0 %v1604
        %1935 = vmatmul.mubr.bf16.gmra.mrb[0].mxu0 %v1603
        %v1936 = vpop.f32.mrb[0].mxu0
        %v1937 = vadd.f32 %v1700, %v1936
        %v1938 = vpop.f32.mrb[0].mxu0
        %v1939 = vpop.f32.mrb[0].mxu0
        %v1940 = vadd.f32 %v1700, %v1939
        %v1941 = vpop.f32.mrb[0].mxu0
        %1942 = vmatprep.mubr.bf16.mxu0 %v1608
        %1943 = vmatmul.mubr.bf16.gmra.mrb[0].mxu0 %v1607
        %v1944 = vpop.f32.mrb[0].mxu0
        %v1945 = vadd.f32 %v1700, %v1944
        %v1946 = vpop.f32.mrb[0].mxu0
        %v1947 = vpop.f32.mrb[0].mxu0
        %v1948 = vadd.f32 %v1700, %v1947
        %v1949 = vpop.f32.mrb[0].mxu0
        %1950 = vmatprep.mubr.bf16.mxu0 %v1612
        %1951 = vmatmul.mubr.bf16.gmra.mrb[0].mxu0 %v1611
        %v1952 = vpop.f32.mrb[0].mxu0
        %v1953 = vadd.f32 %v1700, %v1952
        %v1954 = vpop.f32.mrb[0].mxu0
        %v1955 = vpop.f32.mrb[0].mxu0
        %v1956 = vadd.f32 %v1700, %v1955
        %v1957 = vpop.f32.mrb[0].mxu0
        %1958 = vmatprep.mubr.bf16.mxu0 %v1616
        %1959 = vmatmul.mubr.bf16.gmra.mrb[0].mxu0 %v1615
        %v1960 = vpop.f32.mrb[0].mxu0
        %v1961 = vadd.f32 %v1700, %v1960
        %v1962 = vpop.f32.mrb[0].mxu0
        %v1963 = vpop.f32.mrb[0].mxu0
        %v1964 = vadd.f32 %v1700, %v1963
        %v1965 = vpop.f32.mrb[0].mxu0
        %1966 = vmatprep.mubr.bf16.mxu0 %v1620
        %1967 = vmatmul.mubr.bf16.gmra.mrb[0].mxu0 %v1619
        %v1968 = vpop.f32.mrb[0].mxu0
        %v1969 = vadd.f32 %v1700, %v1968
        %v1970 = vpop.f32.mrb[0].mxu0
        %v1971 = vpop.f32.mrb[0].mxu0
        %v1972 = vadd.f32 %v1700, %v1971
        %v1973 = vpop.f32.mrb[0].mxu0
        %1974 = vmatprep.mubr.bf16.mxu0 %v1624
        %1975 = vmatmul.mubr.bf16.gmra.mrb[0].mxu0 %v1623
        %v1976 = vpop.f32.mrb[0].mxu0
        %v1977 = vadd.f32 %v1700, %v1976
        %v1978 = vpop.f32.mrb[0].mxu0
        %v1979 = vpop.f32.mrb[0].mxu0
        %v1980 = vadd.f32 %v1700, %v1979
        %v1981 = vpop.f32.mrb[0].mxu0
        %1982 = vmatprep.mubr.bf16.mxu0 %v1628
        %1983 = vmatmul.mubr.bf16.gmra.mrb[0].mxu0 %v1627
        %v1984 = vpop.f32.mrb[0].mxu0
        %v1985 = vadd.f32 %v1700, %v1984
        %v1986 = vpop.f32.mrb[0].mxu0
        %v1987 = vpop.f32.mrb[0].mxu0
        %v1988 = vadd.f32 %v1700, %v1987
        %v1989 = vpop.f32.mrb[0].mxu0
        %1990 = vdwg.mxu0
        %1991 = vmatprep.subr.bf16.mxu0 0
        %1992 = vmatpush1.bf16.msra.mxu0 %v1846
        %1993 = vmatprep.subr.bf16.mxu0 0
        %1994 = vmatpush1.bf16.msra.mxu0 %v1847
        %1995 = vmatprep.subr.bf16.mxu0 0
        %1996 = vmatpush1.bf16.msra.mxu0 %v1848
        %1997 = vmatprep.subr.bf16.mxu0 0
        %1998 = vmatpush1.bf16.msra.mxu0 %v1849
        %1999 = vmatprep.subr.bf16.mxu0 0
        %2000 = vmatpush1.bf16.msra.mxu0 %v1850
        %2001 = vmatprep.subr.bf16.mxu0 0
        %2002 = vmatpush1.bf16.msra.mxu0 %v1851
        %2003 = vmatprep.subr.bf16.mxu0 0
        %2004 = vmatpush1.bf16.msra.mxu0 %v1852
        %2005 = vmatprep.subr.bf16.mxu0 0
        %2006 = vmatpush1.bf16.msra.mxu0 %v1853
        %2007 = vmatprep.subr.bf16.mxu0 0
        %2008 = vmatpush1.bf16.msra.mxu0 %v1854
        %2009 = vmatprep.subr.bf16.mxu0 0
        %2010 = vmatpush1.bf16.msra.mxu0 %v1855
        %2011 = vmatprep.subr.bf16.mxu0 0
        %2012 = vmatpush1.bf16.msra.mxu0 %v1856
        %2013 = vmatprep.subr.bf16.mxu0 0
        %2014 = vmatpush1.bf16.msra.mxu0 %v1857
        %2015 = vmatprep.subr.bf16.mxu0 0
        %2016 = vmatpush1.bf16.msra.mxu0 %v1858
        %2017 = vmatprep.subr.bf16.mxu0 0
        %2018 = vmatpush1.bf16.msra.mxu0 %v1859
        %2019 = vmatprep.subr.bf16.mxu0 0
        %2020 = vmatpush1.bf16.msra.mxu0 %v1860
        %2021 = vmatprep.subr.bf16.mxu0 0
        %2022 = vmatpush1.bf16.msra.mxu0 %v1861
        %2023 = vmatprep.mubr.bf16.mxu0 %v1602
        %2024 = vmatmul.mubr.bf16.gmra.mrb[0].mxu0 %v1601
        %v2025 = vpop.f32.mrb[0].mxu0
        %v2026 = vadd.f32 %v1929, %v2025
        %v2027 = vpop.f32.mrb[0].mxu0
        %v2028 = vpop.f32.mrb[0].mxu0
        %v2029 = vadd.f32 %v1932, %v2028
        %v2030 = vpop.f32.mrb[0].mxu0
        %2031 = vmatprep.mubr.bf16.mxu0 %v1606
        %2032 = vmatmul.mubr.bf16.gmra.mrb[0].mxu0 %v1605
        %v2033 = vpop.f32.mrb[0].mxu0
        %v2034 = vadd.f32 %v1937, %v2033
        %v2035 = vpop.f32.mrb[0].mxu0
        %v2036 = vpop.f32.mrb[0].mxu0
        %v2037 = vadd.f32 %v1940, %v2036
        %v2038 = vpop.f32.mrb[0].mxu0
        %2039 = vmatprep.mubr.bf16.mxu0 %v1610
        %2040 = vmatmul.mubr.bf16.gmra.mrb[0].mxu0 %v1609
        %v2041 = vpop.f32.mrb[0].mxu0
        %v2042 = vadd.f32 %v1945, %v2041
        %v2043 = vpop.f32.mrb[0].mxu0
        %v2044 = vpop.f32.mrb[0].mxu0
        %v2045 = vadd.f32 %v1948, %v2044
        %v2046 = vpop.f32.mrb[0].mxu0
        %2047 = vmatprep.mubr.bf16.mxu0 %v1614
        %2048 = vmatmul.mubr.bf16.gmra.mrb[0].mxu0 %v1613
        %v2049 = vpop.f32.mrb[0].mxu0
        %v2050 = vadd.f32 %v1953, %v2049
        %v2051 = vpop.f32.mrb[0].mxu0
        %v2052 = vpop.f32.mrb[0].mxu0
        %v2053 = vadd.f32 %v1956, %v2052
        %v2054 = vpop.f32.mrb[0].mxu0
        %2055 = vmatprep.mubr.bf16.mxu0 %v1618
        %2056 = vmatmul.mubr.bf16.gmra.mrb[0].mxu0 %v1617
        %v2057 = vpop.f32.mrb[0].mxu0
        %v2058 = vadd.f32 %v1961, %v2057
        %v2059 = vpop.f32.mrb[0].mxu0
        %v2060 = vpop.f32.mrb[0].mxu0
        %v2061 = vadd.f32 %v1964, %v2060
        %v2062 = vpop.f32.mrb[0].mxu0
        %2063 = vmatprep.mubr.bf16.mxu0 %v1622
        %2064 = vmatmul.mubr.bf16.gmra.mrb[0].mxu0 %v1621
        %v2065 = vpop.f32.mrb[0].mxu0
        %v2066 = vadd.f32 %v1969, %v2065
        %v2067 = vpop.f32.mrb[0].mxu0
        %v2068 = vpop.f32.mrb[0].mxu0
        %v2069 = vadd.f32 %v1972, %v2068
        %v2070 = vpop.f32.mrb[0].mxu0
        %2071 = vmatprep.mubr.bf16.mxu0 %v1626
        %2072 = vmatmul.mubr.bf16.gmra.mrb[0].mxu0 %v1625
        %v2073 = vpop.f32.mrb[0].mxu0
        %v2074 = vadd.f32 %v1977, %v2073
        %v2075 = vpop.f32.mrb[0].mxu0
        %v2076 = vpop.f32.mrb[0].mxu0
        %v2077 = vadd.f32 %v1980, %v2076
        %v2078 = vpop.f32.mrb[0].mxu0
        %2079 = vmatprep.mubr.bf16.mxu0 %v1630
        %2080 = vmatmul.mubr.bf16.gmra.mrb[0].mxu0 %v1629
        %v2081 = vpop.f32.mrb[0].mxu0
        %v2082 = vadd.f32 %v1985, %v2081
        %v2083 = vpop.f32.mrb[0].mxu0
        %v2084 = vpop.f32.mrb[0].mxu0
        %v2085 = vadd.f32 %v1988, %v2084
        %v2086 = vpop.f32.mrb[0].mxu0
        %2087 = vdwg.mxu0
        %s2088 = smul.u32 %s26, 2
        %s2089 = sadd.s32 %s2088, %s27
        %s2090 = smul.u32 %s2089, 128
        %v2091 = vlaneseq
        %v2092 = vshrl.u32 %v2091, 7
        %v2093 = vadd.s32 %v2092, 8
        %v2094 = vadd.s32 %v2092, 16
        %v2095 = vadd.s32 %v2092, 24
        %v2096 = vadd.s32 %v2092, 32
        %v2097 = vadd.s32 %v2092, 40
        %v2098 = vadd.s32 %v2092, 48
        %v2099 = vadd.s32 %v2092, 56
        %v2100 = vadd.s32 %v2092, 64
        %v2101 = vadd.s32 %v2092, 72
        %v2102 = vadd.s32 %v2092, 80
        %v2103 = vadd.s32 %v2092, 88
        %v2104 = vadd.s32 %v2092, 96
        %v2105 = vadd.s32 %v2092, 104
        %v2106 = vadd.s32 %v2092, 112
        %v2107 = vadd.s32 %v2092, 120
        %v2108 = vstv %s2090
        %v2109 = vadd.s32 %v2108, %v2092
        %v2110 = vadd.s32 %v2108, %v2093
        %v2111 = vadd.s32 %v2108, %v2094
        %v2112 = vadd.s32 %v2108, %v2095
        %v2113 = vadd.s32 %v2108, %v2096
        %v2114 = vadd.s32 %v2108, %v2097
        %v2115 = vadd.s32 %v2108, %v2098
        %v2116 = vadd.s32 %v2108, %v2099
        %v2117 = vadd.s32 %v2108, %v2100
        %v2118 = vadd.s32 %v2108, %v2101
        %v2119 = vadd.s32 %v2108, %v2102
        %v2120 = vadd.s32 %v2108, %v2103
        %v2121 = vadd.s32 %v2108, %v2104
        %v2122 = vadd.s32 %v2108, %v2105
        %v2123 = vadd.s32 %v2108, %v2106
        %v2124 = vadd.s32 %v2108, %v2107
        %vm2125 = vcmp.lt.s32.totalorder %v2109, 200
        %vm2126 = vcmp.lt.s32.totalorder %v2110, 200
        %vm2127 = vcmp.lt.s32.totalorder %v2111, 200
        %vm2128 = vcmp.lt.s32.totalorder %v2112, 200
        %vm2129 = vcmp.lt.s32.totalorder %v2113, 200
        %vm2130 = vcmp.lt.s32.totalorder %v2114, 200
        %vm2131 = vcmp.lt.s32.totalorder %v2115, 200
        %vm2132 = vcmp.lt.s32.totalorder %v2116, 200
        %vm2133 = vcmp.lt.s32.totalorder %v2117, 200
        %vm2134 = vcmp.lt.s32.totalorder %v2118, 200
        %vm2135 = vcmp.lt.s32.totalorder %v2119, 200
        %vm2136 = vcmp.lt.s32.totalorder %v2120, 200
        %vm2137 = vcmp.lt.s32.totalorder %v2121, 200
        %vm2138 = vcmp.lt.s32.totalorder %v2122, 200
        %vm2139 = vcmp.lt.s32.totalorder %v2123, 200
        %vm2140 = vcmp.lt.s32.totalorder %v2124, 200
        %v2141 = vsel %vm2125, 1, 0
        %v2142 = vsel %vm2126, 1, 0
        %v2143 = vsel %vm2127, 1, 0
        %v2144 = vsel %vm2128, 1, 0
        %v2145 = vsel %vm2129, 1, 0
        %v2146 = vsel %vm2130, 1, 0
        %v2147 = vsel %vm2131, 1, 0
        %v2148 = vsel %vm2132, 1, 0
        %v2149 = vsel %vm2133, 1, 0
        %v2150 = vsel %vm2134, 1, 0
        %v2151 = vsel %vm2135, 1, 0
        %v2152 = vsel %vm2136, 1, 0
        %v2153 = vsel %vm2137, 1, 0
        %v2154 = vsel %vm2138, 1, 0
        %v2155 = vsel %vm2139, 1, 0
        %v2156 = vsel %vm2140, 1, 0
        %vm2157 = vcmp.eq.s32.totalorder %v2141, 1
        %vm2158 = vcmp.eq.s32.totalorder %v2142, 1
        %vm2159 = vcmp.eq.s32.totalorder %v2143, 1
        %vm2160 = vcmp.eq.s32.totalorder %v2144, 1
        %vm2161 = vcmp.eq.s32.totalorder %v2145, 1
        %vm2162 = vcmp.eq.s32.totalorder %v2146, 1
        %vm2163 = vcmp.eq.s32.totalorder %v2147, 1
        %vm2164 = vcmp.eq.s32.totalorder %v2148, 1
        %vm2165 = vcmp.eq.s32.totalorder %v2149, 1
        %vm2166 = vcmp.eq.s32.totalorder %v2150, 1
        %vm2167 = vcmp.eq.s32.totalorder %v2151, 1
        %vm2168 = vcmp.eq.s32.totalorder %v2152, 1
        %vm2169 = vcmp.eq.s32.totalorder %v2153, 1
        %vm2170 = vcmp.eq.s32.totalorder %v2154, 1
        %vm2171 = vcmp.eq.s32.totalorder %v2155, 1
        %vm2172 = vcmp.eq.s32.totalorder %v2156, 1
        %v2173 = vsel %vm2157, %v2026, -inf
        %v2174 = vsel %vm2158, %v2029, -inf
        %v2175 = vsel %vm2159, %v2034, -inf
        %v2176 = vsel %vm2160, %v2037, -inf
        %v2177 = vsel %vm2161, %v2042, -inf
        %v2178 = vsel %vm2162, %v2045, -inf
        %v2179 = vsel %vm2163, %v2050, -inf
        %v2180 = vsel %vm2164, %v2053, -inf
        %v2181 = vsel %vm2165, %v2058, -inf
        %v2182 = vsel %vm2166, %v2061, -inf
        %v2183 = vsel %vm2167, %v2066, -inf
        %v2184 = vsel %vm2168, %v2069, -inf
        %v2185 = vsel %vm2169, %v2074, -inf
        %v2186 = vsel %vm2170, %v2077, -inf
        %v2187 = vsel %vm2171, %v2082, -inf
        %v2188 = vsel %vm2172, %v2085, -inf
        %v2189 = vld [vmem:[#allocation2] sm:$0x1]
        %vm2190 = vcmask 15360
        %v2191 = vsel %vm2190, %v2173, -inf
        %v2192 = vsel %vm2190, %v2174, -inf
        %v2193 = vsel %vm2190, %v2175, -inf
        %v2194 = vsel %vm2190, %v2176, -inf
        %v2195 = vsel %vm2190, %v2177, -inf
        %v2196 = vmax.f32 %v2191, %v2195
        %v2197 = vsel %vm2190, %v2178, -inf
        %v2198 = vmax.f32 %v2192, %v2197
        %v2199 = vsel %vm2190, %v2179, -inf
        %v2200 = vmax.f32 %v2193, %v2199
        %v2201 = vsel %vm2190, %v2180, -inf
        %v2202 = vmax.f32 %v2194, %v2201
        %v2203 = vsel %vm2190, %v2181, -inf
        %v2204 = vmax.f32 %v2196, %v2203
        %v2205 = vsel %vm2190, %v2182, -inf
        %v2206 = vmax.f32 %v2198, %v2205
        %v2207 = vsel %vm2190, %v2183, -inf
        %v2208 = vmax.f32 %v2200, %v2207
        %v2209 = vsel %vm2190, %v2184, -inf
        %v2210 = vmax.f32 %v2202, %v2209
        %v2211 = vsel %vm2190, %v2185, -inf
        %v2212 = vmax.f32 %v2204, %v2211
        %v2213 = vsel %vm2190, %v2186, -inf
        %v2214 = vmax.f32 %v2206, %v2213
        %v2215 = vsel %vm2190, %v2187, -inf
        %v2216 = vmax.f32 %v2208, %v2215
        %v2217 = vsel %vm2190, %v2188, -inf
        %v2218 = vmax.f32 %v2210, %v2217
        %v2219 = vmax.f32 %v2212, %v2214
        %v2220 = vmax.f32 %v2216, %v2218
        %v2221 = vmax.f32 %v2219, %v2220
        %v2222 = vrot.slane %v2221, 4
        %v2223 = vmax.f32 %v2221, %v2222
        %v2224 = vrot.slane %v2223, 2
        %v2225 = vmax.f32 %v2223, %v2224
        %v2226 = vrot.slane %v2225, 1
        %v2227 = vmax.f32 %v2225, %v2226
        %v2228 = vmax.f32 %v2189, %v2227
        %vm2229 = vcmp.eq.f32.partialorder %v2228, -inf
        %v2230 = vsel %vm2229, 0.0, %v2228
        %v2231 = vsub.f32 %v2189, %v2230
        %v2232 = vmul.f32 %v2231, 1.442695
        %v2233 = vpow.pop %v2232
        %v2235 = vlaneseq
        %v2236 = vshrl.u32 %v2235, 7
        %v2237 = vsub.s32 0, %v2236
        %v2238 = vrot.slane %v2230, %v2237
        %v2240 = vsub.f32 %v2173, %v2238
        %v2241 = vsub.f32 %v2174, %v2238
        %v2242 = vsub.f32 %v2175, %v2238
        %v2243 = vsub.f32 %v2176, %v2238
        %v2244 = vsub.f32 %v2177, %v2238
        %v2245 = vsub.f32 %v2178, %v2238
        %v2246 = vsub.f32 %v2179, %v2238
        %v2247 = vsub.f32 %v2180, %v2238
        %v2248 = vsub.f32 %v2181, %v2238
        %v2249 = vsub.f32 %v2182, %v2238
        %v2250 = vsub.f32 %v2183, %v2238
        %v2251 = vsub.f32 %v2184, %v2238
        %v2252 = vsub.f32 %v2185, %v2238
        %v2253 = vsub.f32 %v2186, %v2238
        %v2254 = vsub.f32 %v2187, %v2238
        %v2255 = vsub.f32 %v2188, %v2238
        %v2256 = vmul.f32 %v2240, 1.442695
        %v2257 = vpow.pop %v2256
        %v2258 = vmul.f32 %v2241, 1.442695
        %v2259 = vpow.pop %v2258
        %v2260 = vmul.f32 %v2242, 1.442695
        %v2261 = vpow.pop %v2260
        %v2262 = vmul.f32 %v2243, 1.442695
        %v2263 = vpow.pop %v2262
        %v2264 = vmul.f32 %v2244, 1.442695
        %v2265 = vpow.pop %v2264
        %v2266 = vmul.f32 %v2245, 1.442695
        %v2267 = vpow.pop %v2266
        %v2268 = vmul.f32 %v2246, 1.442695
        %v2269 = vpow.pop %v2268
        %v2270 = vmul.f32 %v2247, 1.442695
        %v2271 = vpow.pop %v2270
        %v2272 = vmul.f32 %v2248, 1.442695
        %v2273 = vpow.pop %v2272
        %v2274 = vmul.f32 %v2249, 1.442695
        %v2275 = vpow.pop %v2274
        %v2276 = vmul.f32 %v2250, 1.442695
        %v2277 = vpow.pop %v2276
        %v2278 = vmul.f32 %v2251, 1.442695
        %v2279 = vpow.pop %v2278
        %v2280 = vmul.f32 %v2252, 1.442695
        %v2281 = vpow.pop %v2280
        %v2282 = vmul.f32 %v2253, 1.442695
        %v2283 = vpow.pop %v2282
        %v2284 = vmul.f32 %v2254, 1.442695
        %v2285 = vpow.pop %v2284
        %v2286 = vmul.f32 %v2255, 1.442695
        %v2287 = vpow.pop %v2286
        %v2288 = vld [vmem:[#allocation3] sm:$0x1]
        %v2289 = vmul.f32 %v2233, %v2288
        %v2290 = vsel %vm2190, %v2257, 0.0
        %v2291 = vsel %vm2190, %v2259, 0.0
        %v2292 = vadd.f32 %v2290, %v2291
        %v2293 = vsel %vm2190, %v2261, 0.0
        %v2294 = vadd.f32 %v2292, %v2293
        %v2295 = vsel %vm2190, %v2263, 0.0
        %v2296 = vadd.f32 %v2294, %v2295
        %v2297 = vsel %vm2190, %v2265, 0.0
        %v2298 = vadd.f32 %v2296, %v2297
        %v2299 = vsel %vm2190, %v2267, 0.0
        %v2300 = vadd.f32 %v2298, %v2299
        %v2301 = vsel %vm2190, %v2269, 0.0
        %v2302 = vadd.f32 %v2300, %v2301
        %v2303 = vsel %vm2190, %v2271, 0.0
        %v2304 = vadd.f32 %v2302, %v2303
        %v2305 = vsel %vm2190, %v2273, 0.0
        %v2306 = vadd.f32 %v2304, %v2305
        %v2307 = vsel %vm2190, %v2275, 0.0
        %v2308 = vadd.f32 %v2306, %v2307
        %v2309 = vsel %vm2190, %v2277, 0.0
        %v2310 = vadd.f32 %v2308, %v2309
        %v2311 = vsel %vm2190, %v2279, 0.0
        %v2312 = vadd.f32 %v2310, %v2311
        %v2313 = vsel %vm2190, %v2281, 0.0
        %v2314 = vadd.f32 %v2312, %v2313
        %v2315 = vsel %vm2190, %v2283, 0.0
        %v2316 = vadd.f32 %v2314, %v2315
        %v2317 = vsel %vm2190, %v2285, 0.0
        %v2318 = vadd.f32 %v2316, %v2317
        %v2319 = vsel %vm2190, %v2287, 0.0
        %v2320 = vadd.f32 %v2318, %v2319
        %v2321 = vrot.slane %v2320, 4
        %v2322 = vadd.f32 %v2320, %v2321
        %v2323 = vrot.slane %v2322, 2
        %v2324 = vadd.f32 %v2322, %v2323
        %v2325 = vrot.slane %v2324, 1
        %v2326 = vadd.f32 %v2324, %v2325
        %v2327 = vadd.f32 %v2289, %v2326
        %vm2328 = vcmask 8192
        %2329 = vst.msk [vmem:[#allocation3] sm:$0x1] %vm2328, %v2327
        %2330 = vst.msk [vmem:[#allocation2] sm:$0x1] %vm2328, %v2228
        %2332 = vset.pattern.permute.xlu0 0
        %2333 = vperm.xlu0 %2332, %v2257
        %v2334 = vpop.permute.xlu0 %2333
        %2337 = vset.pattern.permute.xlu0 0
        %2338 = vperm.xlu0 %2337, %v2259
        %v2339 = vpop.permute.xlu0 %2338
        %2342 = vset.pattern.permute.xlu0 0
        %2343 = vperm.xlu0 %2342, %v2261
        %v2344 = vpop.permute.xlu0 %2343
        %2347 = vset.pattern.permute.xlu0 0
        %2348 = vperm.xlu0 %2347, %v2263
        %v2349 = vpop.permute.xlu0 %2348
        %2352 = vset.pattern.permute.xlu0 0
        %2353 = vperm.xlu0 %2352, %v2265
        %v2354 = vpop.permute.xlu0 %2353
        %2357 = vset.pattern.permute.xlu0 0
        %2358 = vperm.xlu0 %2357, %v2267
        %v2359 = vpop.permute.xlu0 %2358
        %2362 = vset.pattern.permute.xlu0 0
        %2363 = vperm.xlu0 %2362, %v2269
        %v2364 = vpop.permute.xlu0 %2363
        %2367 = vset.pattern.permute.xlu0 0
        %2368 = vperm.xlu0 %2367, %v2271
        %v2369 = vpop.permute.xlu0 %2368
        %2372 = vset.pattern.permute.xlu0 0
        %2373 = vperm.xlu0 %2372, %v2273
        %v2374 = vpop.permute.xlu0 %2373
        %2377 = vset.pattern.permute.xlu0 0
        %2378 = vperm.xlu0 %2377, %v2275
        %v2379 = vpop.permute.xlu0 %2378
        %2382 = vset.pattern.permute.xlu0 0
        %2383 = vperm.xlu0 %2382, %v2277
        %v2384 = vpop.permute.xlu0 %2383
        %2387 = vset.pattern.permute.xlu0 0
        %2388 = vperm.xlu0 %2387, %v2279
        %v2389 = vpop.permute.xlu0 %2388
        %2392 = vset.pattern.permute.xlu0 0
        %2393 = vperm.xlu0 %2392, %v2281
        %v2394 = vpop.permute.xlu0 %2393
        %2397 = vset.pattern.permute.xlu0 0
        %2398 = vperm.xlu0 %2397, %v2283
        %v2399 = vpop.permute.xlu0 %2398
        %2402 = vset.pattern.permute.xlu0 0
        %2403 = vperm.xlu0 %2402, %v2285
        %v2404 = vpop.permute.xlu0 %2403
        %2407 = vset.pattern.permute.xlu0 0
        %2408 = vperm.xlu0 %2407, %v2287
        %v2409 = vpop.permute.xlu0 %2408
        %v2411 = vmul.f32 %v2334, %v337
        %v2412 = vmul.f32 %v2339, %v338
        %v2413 = vmul.f32 %v2344, %v339
        %v2414 = vmul.f32 %v2349, %v340
        %v2415 = vmul.f32 %v2354, %v341
        %v2416 = vmul.f32 %v2359, %v342
        %v2417 = vmul.f32 %v2364, %v343
        %v2418 = vmul.f32 %v2369, %v344
        %v2419 = vmul.f32 %v2374, %v345
        %v2420 = vmul.f32 %v2379, %v346
        %v2421 = vmul.f32 %v2384, %v347
        %v2422 = vmul.f32 %v2389, %v348
        %v2423 = vmul.f32 %v2394, %v349
        %v2424 = vmul.f32 %v2399, %v350
        %v2425 = vmul.f32 %v2404, %v351
        %v2426 = vmul.f32 %v2409, %v352
        %v2427 = vadd.f32 %v2411, %v2412
        %v2428 = vadd.f32 %v2427, %v2413
        %v2429 = vadd.f32 %v2428, %v2414
        %v2430 = vadd.f32 %v2429, %v2415
        %v2431 = vadd.f32 %v2430, %v2416
        %v2432 = vadd.f32 %v2431, %v2417
        %v2433 = vadd.f32 %v2432, %v2418
        %v2434 = vadd.f32 %v2433, %v2419
        %v2435 = vadd.f32 %v2434, %v2420
        %v2436 = vadd.f32 %v2435, %v2421
        %v2437 = vadd.f32 %v2436, %v2422
        %v2438 = vadd.f32 %v2437, %v2423
        %v2439 = vadd.f32 %v2438, %v2424
        %v2440 = vadd.f32 %v2439, %v2425
        %v2441 = vadd.f32 %v2440, %v2426
        %v2442 = vrot.slane %v2441, 4
        %v2443 = vadd.f32 %v2441, %v2442
        %v2444 = vrot.slane %v2443, 2
        %v2445 = vadd.f32 %v2443, %v2444
        %v2446 = vrot.slane %v2445, 1
        %v2447 = vadd.f32 %v2445, %v2446
        %v2448 = vld [vmem:[#allocation4] sm:$0x1]
        %2450 = vset.pattern.permute.xlu0 0
        %2451 = vperm.xlu0 %2450, %v2233
        %v2452 = vpop.permute.xlu0 %2451
        %v2454 = vlaneseq
        %v2455 = vshrl.u32 %v2454, 7
        %v2456 = vsub.s32 0, %v2455
        %v2457 = vrot.slane %v2452, %v2456
        %v2458 = vmul.f32 %v2457, %v2448
        %v2459 = vadd.f32 %v2458, %v2447
        %2460 = vst [vmem:[#allocation4] sm:$0x1] %v2459
        %2461 = vset.pattern.permute.xlu0 1
        %2462 = vperm.xlu0 %2461, %v2257
        %v2463 = vpop.permute.xlu0 %2462
        %2465 = vset.pattern.permute.xlu0 1
        %2466 = vperm.xlu0 %2465, %v2259
        %v2467 = vpop.permute.xlu0 %2466
        %2469 = vset.pattern.permute.xlu0 1
        %2470 = vperm.xlu0 %2469, %v2261
        %v2471 = vpop.permute.xlu0 %2470
        %2473 = vset.pattern.permute.xlu0 1
        %2474 = vperm.xlu0 %2473, %v2263
        %v2475 = vpop.permute.xlu0 %2474
        %2477 = vset.pattern.permute.xlu0 1
        %2478 = vperm.xlu0 %2477, %v2265
        %v2479 = vpop.permute.xlu0 %2478
        %2481 = vset.pattern.permute.xlu0 1
        %2482 = vperm.xlu0 %2481, %v2267
        %v2483 = vpop.permute.xlu0 %2482
        %2485 = vset.pattern.permute.xlu0 1
        %2486 = vperm.xlu0 %2485, %v2269
        %v2487 = vpop.permute.xlu0 %2486
        %2489 = vset.pattern.permute.xlu0 1
        %2490 = vperm.xlu0 %2489, %v2271
        %v2491 = vpop.permute.xlu0 %2490
        %2493 = vset.pattern.permute.xlu0 1
        %2494 = vperm.xlu0 %2493, %v2273
        %v2495 = vpop.permute.xlu0 %2494
        %2497 = vset.pattern.permute.xlu0 1
        %2498 = vperm.xlu0 %2497, %v2275
        %v2499 = vpop.permute.xlu0 %2498
        %2501 = vset.pattern.permute.xlu0 1
        %2502 = vperm.xlu0 %2501, %v2277
        %v2503 = vpop.permute.xlu0 %2502
        %2505 = vset.pattern.permute.xlu0 1
        %2506 = vperm.xlu0 %2505, %v2279
        %v2507 = vpop.permute.xlu0 %2506
        %2509 = vset.pattern.permute.xlu0 1
        %2510 = vperm.xlu0 %2509, %v2281
        %v2511 = vpop.permute.xlu0 %2510
        %2513 = vset.pattern.permute.xlu0 1
        %2514 = vperm.xlu0 %2513, %v2283
        %v2515 = vpop.permute.xlu0 %2514
        %2517 = vset.pattern.permute.xlu0 1
        %2518 = vperm.xlu0 %2517, %v2285
        %v2519 = vpop.permute.xlu0 %2518
        %2521 = vset.pattern.permute.xlu0 1
        %2522 = vperm.xlu0 %2521, %v2287
        %v2523 = vpop.permute.xlu0 %2522
        %v2525 = vmul.f32 %v2463, %v337
        %v2526 = vmul.f32 %v2467, %v338
        %v2527 = vmul.f32 %v2471, %v339
        %v2528 = vmul.f32 %v2475, %v340
        %v2529 = vmul.f32 %v2479, %v341
        %v2530 = vmul.f32 %v2483, %v342
        %v2531 = vmul.f32 %v2487, %v343
        %v2532 = vmul.f32 %v2491, %v344
        %v2533 = vmul.f32 %v2495, %v345
        %v2534 = vmul.f32 %v2499, %v346
        %v2535 = vmul.f32 %v2503, %v347
        %v2536 = vmul.f32 %v2507, %v348
        %v2537 = vmul.f32 %v2511, %v349
        %v2538 = vmul.f32 %v2515, %v350
        %v2539 = vmul.f32 %v2519, %v351
        %v2540 = vmul.f32 %v2523, %v352
        %v2541 = vadd.f32 %v2525, %v2526
        %v2542 = vadd.f32 %v2541, %v2527
        %v2543 = vadd.f32 %v2542, %v2528
        %v2544 = vadd.f32 %v2543, %v2529
        %v2545 = vadd.f32 %v2544, %v2530
        %v2546 = vadd.f32 %v2545, %v2531
        %v2547 = vadd.f32 %v2546, %v2532
        %v2548 = vadd.f32 %v2547, %v2533
        %v2549 = vadd.f32 %v2548, %v2534
        %v2550 = vadd.f32 %v2549, %v2535
        %v2551 = vadd.f32 %v2550, %v2536
        %v2552 = vadd.f32 %v2551, %v2537
        %v2553 = vadd.f32 %v2552, %v2538
        %v2554 = vadd.f32 %v2553, %v2539
        %v2555 = vadd.f32 %v2554, %v2540
        %v2556 = vrot.slane %v2555, 4
        %v2557 = vadd.f32 %v2555, %v2556
        %v2558 = vrot.slane %v2557, 2
        %v2559 = vadd.f32 %v2557, %v2558
        %v2560 = vrot.slane %v2559, 1
        %v2561 = vadd.f32 %v2559, %v2560
        %v2562 = vld [vmem:[#allocation4 + $0x1] sm:$0x1]
        %2563 = vset.pattern.permute.xlu0 1
        %2564 = vperm.xlu0 %2563, %v2233
        %v2565 = vpop.permute.xlu0 %2564
        %v2567 = vlaneseq
        %v2568 = vshrl.u32 %v2567, 7
        %v2569 = vsub.s32 0, %v2568
        %v2570 = vrot.slane %v2565, %v2569
        %v2571 = vmul.f32 %v2570, %v2562
        %v2572 = vadd.f32 %v2571, %v2561
        %2573 = vst [vmem:[#allocation4 + $0x1] sm:$0x1] %v2572
        %p2574 = scmp.eq.s32.totalorder %s27, 1
        // Predicated region
        $region65: #{tpu_custom_call.1} parent=39 // pred_check
          %p2575 = pneg %p2574
        $region66: #{tpu_custom_call.1} parent=39 // pred_check_branch
          %2577 = sbr.rel (%p2575) target = $region68
        $region67: #{tpu_custom_call.1} parent=39 // pred_region
          %v2578 = vld [vmem:[#allocation4] sm:$0x3]
          %2579 = vst [vmem:[#allocation14] sm:$0x3] %v2578
          %v2580 = vld [vmem:[#allocation2] sm:$0x1]
          %v2581 = vld [vmem:[#allocation3] sm:$0x1]
          %2583 = vset.pattern.permute.xlu0 0
          %2584 = vperm.xlu0 %2583, %v2580
          %v2585 = vpop.permute.xlu0 %2584
          %v2587 = vlaneseq
          %v2588 = vshrl.u32 %v2587, 7
          %v2589 = vsub.s32 0, %v2588
          %v2590 = vrot.slane %v2585, %v2589
          %2591 = vst [vmem:[#allocation14 + $0x2] sm:$0x1] %v2590
          %2593 = vset.pattern.permute.xlu0 0
          %2594 = vperm.xlu0 %2593, %v2581
          %v2595 = vpop.permute.xlu0 %2594
          %v2597 = vlaneseq
          %v2598 = vshrl.u32 %v2597, 7
          %v2599 = vsub.s32 0, %v2598
          %v2600 = vrot.slane %v2595, %v2599
          %2601 = vst [vmem:[#allocation14 + $0x4] sm:$0x1] %v2600
          %2602 = vset.pattern.permute.xlu0 1
          %2603 = vperm.xlu0 %2602, %v2580
          %v2604 = vpop.permute.xlu0 %2603
          %v2606 = vlaneseq
          %v2607 = vshrl.u32 %v2606, 7
          %v2608 = vsub.s32 0, %v2607
          %v2609 = vrot.slane %v2604, %v2608
          %2610 = vst [vmem:[#allocation14 + $0x3] sm:$0x1] %v2609
          %2611 = vset.pattern.permute.xlu0 1
          %2612 = vperm.xlu0 %2611, %v2581
          %v2613 = vpop.permute.xlu0 %2612
          %v2615 = vlaneseq
          %v2616 = vshrl.u32 %v2615, 7
          %v2617 = vsub.s32 0, %v2616
          %v2618 = vrot.slane %v2613, %v2617
          %2619 = vst [vmem:[#allocation14 + $0x5] sm:$0x1] %v2618
          %2620 = vst [vmem:[#allocation14 + $0x6] sm:$0x3] 0.0
        $region68: #{tpu_custom_call.1} parent=39 // pred_fallthru
          _
        // Predicated region
        $region69: #{tpu_custom_call.1} parent=39 // pred_check
          %p2621 = pneg %p166
        $region70: #{tpu_custom_call.1} parent=39 // pred_check_branch
          %2623 = sbr.rel (%p2621) target = $region72
        $region71: #{tpu_custom_call.1} parent=39 // pred_region
          %s2625 = ssub.s32 128, 128
          %2626 = vsyncadd [#allocation7], %s2625
          %s2627 = smul.addr %s26, 128
          %s2628 = scalar_lea.hbm %s5, %s2627
          %s2630 = sshll.u32 [#allocation14], 4
          %s2631 = int_to_ptr.vmem [resolvable:$true] %s2630
          %2633 = dma.vmem_to_hbm [thread:$0]  %s2631, 128, %s2628, [#allocation7]
        $region72: #{tpu_custom_call.1} parent=39 // pred_fallthru
          _
        // Predicated region
        $region73: #{tpu_custom_call.1} parent=39 // pred_check
          %p2634 = pneg %p166
        $region74: #{tpu_custom_call.1} parent=39 // pred_check_branch
          %2636 = sbr.rel (%p2634) target = $region76
        $region75: #{tpu_custom_call.1} parent=39 // pred_region
          %2637 = dma.done [#allocation7], 128
        $region76: #{tpu_custom_call.1} parent=39 // pred_fallthru
          _
      $region40: #{tpu_custom_call.1} parent=5 // pred_fallthru
        _
      %p2638 = scmp.le.s32.totalorder 2, %s17
      // Predicated region
      $region77: #{tpu_custom_call.1} parent=5 // pred_check
        %p2639 = pneg %p2638
      $region78: #{tpu_custom_call.1} parent=5 // pred_check_branch
        %2641 = sbr.rel (%p2639) target = $region80
      $region79: #{tpu_custom_call.1} parent=5 // pred_region
        %s2642 = ssub.s32 %s17, 2
      $region80: #{tpu_custom_call.1} parent=5 // pred_fallthru
        _
    $region6: #{tpu_custom_call.1} parent=1 // loop_footer
      %s21 = sadd.s32 1, %s17
    $region7: #{tpu_custom_call.1} parent=1 // loop_footer_branch
      %16 = sbr.rel target = $region3
    $region8: #{tpu_custom_call.1} parent=1 // loop_exit
      _
    %2643 = vsyncpa [#allocation6], 1
    %s2644 = scalar_lea.sflag [#allocation6], 1
    %2645 = vsyncpa %s2644, 1
    %2646 = vsyncpa [#allocation9], 1
    %2647 = vsyncpa [#allocation12], 1
    %2648 = vsyncpa [#allocation7], 1
    %s2649 = scalar_lea.sflag [#allocation7], 1
    %2650 = vsyncpa %s2649, 1

</llo_original>
